<compile_context>
chip_gen: v5e
topology: v5e:2x2
jax: 0.10.0
libtpu: 0.0.40
codegen_flags: <defaults>
</compile_context>

<pallas_src>
import functools

import numpy as np
import jax
import jax.numpy as jnp
from jax.experimental import pallas as pl
from jax.experimental.pallas import tpu as pltpu


# ----------------------------------------------------------------------------- fused Pallas kernel
def _dqn_kernel(p1_ref, w1_ref, vecs_ref, a_ref, w2_ref, wd_ref, wd2_ref, o_ref,
                *, use_bn, rows2, k2sq, q_pos, n_batch, c1, c2):
    """Single fused forward pass.  All matmuls are plain 2-D f32 MXU dots.

    vecs_ref rows: 0=conv1_b 1=bn1_g 2=bn1_b 3=conv2_b 4=bn2_g 5=bn2_b 6=dense2_b(pad128) 7=dense_b
    """
    V = vecs_ref[...]                                  # [8, 256] -- one tile, all small vectors
    b1 = V[0:1, :c1]
    b2 = V[3:4, :c2]
    bd2 = V[6:7, :128]
    bd = V[7:8, :]                                     # [1, 256]

    def bn(y, g_row, b_row, width):
        # PyTorch training-mode BatchNorm: biased variance over rows (= N*H*W), eps=1e-5.
        g = V[g_row:g_row + 1, :width]
        be = V[b_row:b_row + 1, :width]
        m = jnp.mean(y, axis=0, keepdims=True)
        v = jnp.mean((y - m) ** 2, axis=0, keepdims=True)
        return (y - m) * jax.lax.rsqrt(v + 1e-5) * g + be

    # ---- conv1 as one matmul on im2col patches (+ bias, [bn], relu) -------------------------
    y1 = jnp.dot(p1_ref[...], w1_ref[...], preferred_element_type=jnp.float32) + b1
    if use_bn:
        y1 = bn(y1, 1, 2, c1)
    y1 = jnp.maximum(y1, 0.0)                          # [N*H1*W1, 16]

    # ---- conv2: 0/1 selection matmul gathers the patch rows for every kernel position -------
    ay = jnp.dot(a_ref[...], y1, preferred_element_type=jnp.float32)   # [k2sq*rows2, 16]
    acc2 = jnp.dot(ay[0:rows2, :], w2_ref[0], preferred_element_type=jnp.float32)
    for p in range(1, k2sq):                           # static unrolled loop over kernel positions
        acc2 = acc2 + jnp.dot(ay[p * rows2:(p + 1) * rows2, :], w2_ref[p],
                              preferred_element_type=jnp.float32)
    z2 = acc2 + b2                                     # [rows2, 32]  rows ordered (h2, w2, n)
    if use_bn:
        z2 = bn(z2, 4, 5, c2)
    z2 = jnp.maximum(z2, 0.0)

    # ---- dense (+relu): NCHW flatten order folded into the packed per-position weights ------
    acc3 = jnp.dot(z2[0:n_batch, :], wd_ref[0], preferred_element_type=jnp.float32)
    for q in range(1, q_pos):                          # static unrolled loop over spatial positions
        acc3 = acc3 + jnp.dot(z2[q * n_batch:(q + 1) * n_batch, :], wd_ref[q],
                              preferred_element_type=jnp.float32)
    y3 = jnp.maximum(acc3 + bd, 0.0)                   # [N, 256]

    # ---- dense2 (no activation), lane-padded to 128 output columns --------------------------
    o_ref[...] = jnp.dot(y3, wd2_ref[...], preferred_element_type=jnp.float32) + bd2


def _full_spec(shape):
    n = len(shape)
    return pl.BlockSpec(shape, lambda i, _n=n: (0,) * _n)


# ----------------------------------------------------------------------------- wrapper glue (jit)
def _im2col(x, k, s):
    """x: [N, C, H, W] -> patches [N*Ho*Wo, C*k*k], feature order (C, KH, KW), row order (n, ho, wo).
    Uses a (k//s)^2-slice block gather when k % s == 0 (4 slices for conv1)."""
    N, C, H, W = x.shape
    Ho = (H - k) // s + 1
    Wo = (W - k) // s + 1
    if k % s == 0 and H % s == 0 and W % s == 0:
        B = k // s
        xb = x.reshape(N, C, H // s, s, W // s, s)
        blocks = [xb[:, :, bh:bh + Ho, :, bw:bw + Wo, :] for bh in range(B) for bw in range(B)]
        blk = jnp.stack(blocks, axis=0).reshape(B, B, N, C, Ho, s, Wo, s)
        # axes: 0=bh 1=bw 2=n 3=c 4=ho 5=rh 6=wo 7=rw  ->  (n, ho, wo, c, bh, rh, bw, rw)
        p = blk.transpose(2, 4, 6, 3, 0, 5, 1, 7).reshape(N * Ho * Wo, C * k * k)
    else:  # generic fallback
        cols = [x[:, :, kh:kh + s * Ho:s, kw:kw + s * Wo:s] for kh in range(k) for kw in range(k)]
        p = jnp.stack(cols, axis=0).reshape(k, k, N, C, Ho, Wo)
        p = p.transpose(2, 4, 5, 3, 0, 1).reshape(N * Ho * Wo, C * k * k)
    return p


def init_params(key, input_dim):
    conv1_out = (input_dim - 8) // 4 + 1
    conv2_out = (conv1_out - 4) // 2 + 1
    flat = conv2_out * conv2_out * 32
    ks = jax.random.split(key, 8)
    s = 0.05
    return {
        "conv1_w": jax.random.normal(ks[0], (16, 3, 8, 8), jnp.float32) * s,
        "conv1_b": jax.random.normal(ks[1], (16,), jnp.float32) * s,
        "conv2_w": jax.random.normal(ks[2], (32, 16, 4, 4), jnp.float32) * s,
        "conv2_b": jax.random.normal(ks[3], (32,), jnp.float32) * s,
        "dense_w": jax.random.normal(ks[4], (256, flat), jnp.float32) * s,
        "dense_b": jax.random.normal(ks[5], (256,), jnp.float32) * s,
        "dense2_w": jax.random.normal(ks[6], (4, 256), jnp.float32) * s,
        "dense2_b": jax.random.normal(ks[7], (4,), jnp.float32) * s,
        "bn1_g": jnp.ones((16,), jnp.float32),
        "bn1_b": jnp.zeros((16,), jnp.float32),
        "bn2_g": jnp.ones((32,), jnp.float32),
        "bn2_b": jnp.zeros((32,), jnp.float32),
    }


def pack_params(params, input_dim, batch):
    """One-time layout fixes: reshape/transpose all weights (natural widths, no lane-padding except
    the 128-wide dense2 output), build conv2's static row-selection matrix, fold the NCHW flatten
    into the dense weights, and pack all 1-row vectors into a single (8,256) tile."""
    H1 = (input_dim - 8) // 4 + 1
    H2 = (H1 - 4) // 2 + 1
    Q = H2 * H2
    rows2 = batch * Q
    C1, C2, K2, S2 = 16, 32, 4, 2

    # conv2 im2col as a static 0/1 selection matrix: rows grouped per kernel position p=(kh,kw);
    # within a position, rows ordered (h2, w2, n) so the dense layer consumes contiguous row blocks.
    A = np.zeros((K2 * K2 * rows2, batch * H1 * H1), np.float32)
    for kh in range(K2):
        for kw in range(K2):
            p = kh * K2 + kw
            for hh in range(H2):
                for ww in range(H2):
                    for n in range(batch):
                        r = (hh * H2 + ww) * batch + n
                        r1 = n * H1 * H1 + (S2 * hh + kh) * H1 + (S2 * ww + kw)
                        A[p * rows2 + r, r1] = 1.0

    # conv1: [16,3,8,8] -> [192,16]
    w1 = params["conv1_w"].reshape(C1, -1).T
    # conv2: per kernel position (kh,kw): [C1,C2] slab -> [16,16,32]
    w2 = jnp.transpose(params["conv2_w"], (2, 3, 1, 0)).reshape(K2 * K2, C1, C2)
    # dense: [256, C2*Q] with torch flatten index c2*Q + q  ->  per-position [C2,256] slabs
    wd = jnp.transpose(params["dense_w"].reshape(256, C2, Q), (2, 1, 0))       # [Q, 32, 256]
    # dense2: [4,256] -> [256,128] (output lanes padded to 128; pad columns stay exactly 0)
    wd2 = jnp.zeros((256, 128), jnp.float32).at[:, :4].set(params["dense2_w"].T)

    # all small vectors in one (8,256) tile -> one aligned DMA
    vecs = jnp.zeros((8, 256), jnp.float32)
    vecs = vecs.at[0, :C1].set(params["conv1_b"])
    vecs = vecs.at[1, :C1].set(params["bn1_g"])
    vecs = vecs.at[2, :C1].set(params["bn1_b"])
    vecs = vecs.at[3, :C2].set(params["conv2_b"])
    vecs = vecs.at[4, :C2].set(params["bn2_g"])
    vecs = vecs.at[5, :C2].set(params["bn2_b"])
    vecs = vecs.at[6, :4].set(params["dense2_b"])
    vecs = vecs.at[7, :].set(params["dense_b"])

    return {"w1": w1, "w2": w2, "wd": wd, "wd2": wd2, "vecs": vecs, "A": jnp.asarray(A)}


@functools.partial(jax.jit, static_argnames=("input_dim", "use_batch_norm"))
def dqn_forward(packed, x, *, input_dim, use_batch_norm):
    N = x.shape[0]
    H1 = (input_dim - 8) // 4 + 1
    H2 = (H1 - 4) // 2 + 1
    q_pos = H2 * H2
    rows2 = N * q_pos

    p1 = _im2col(x, 8, 4)                                   # [N*H1*H1, 192]

    inputs = [p1, packed["w1"], packed["vecs"], packed["A"],
              packed["w2"], packed["wd"], packed["wd2"]]

    kernel = functools.partial(_dqn_kernel, use_bn=use_batch_norm,
                               rows2=rows2, k2sq=16, q_pos=q_pos, n_batch=N, c1=16, c2=32)

    out = pl.pallas_call(
        kernel,
        out_shape=jax.ShapeDtypeStruct((N, 128), jnp.float32),
        grid=(1,),
        in_specs=[_full_spec(a.shape) for a in inputs],
        out_specs=_full_spec((N, 128)),
        compiler_params=pltpu.CompilerParams(dimension_semantics=("arbitrary",)),
    )(*inputs)
    return out[:, :4]


# ----------------------------------------------------------------------------- pure-JAX reference
def dqn_reference(params, x, use_batch_norm):
    def bn(y, g, b):
        m = y.mean(axis=(0, 2, 3), keepdims=True)
        v = ((y - m) ** 2).mean(axis=(0, 2, 3), keepdims=True)
        return (y - m) * jax.lax.rsqrt(v + 1e-5) * g[None, :, None, None] + b[None, :, None, None]

    dn = ("NCHW", "OIHW", "NCHW")
    y = jax.lax.conv_general_dilated(x, params["conv1_w"], (4, 4), "VALID",
                                     dimension_numbers=dn) + params["conv1_b"][None, :, None, None]
    if use_batch_norm:
        y = bn(y, params["bn1_g"], params["bn1_b"])
    y = jnp.maximum(y, 0.0)
    y = jax.lax.conv_general_dilated(y, params["conv2_w"], (2, 2), "VALID",
                                     dimension_numbers=dn) + params["conv2_b"][None, :, None, None]
    if use_batch_norm:
        y = bn(y, params["bn2_g"], params["bn2_b"])
    y = jnp.maximum(y, 0.0)
    y = y.reshape(y.shape[0], -1)
    y = jnp.maximum(y @ params["dense_w"].T + params["dense_b"], 0.0)
    return y @ params["dense2_w"].T + params["dense2_b"]


# ----------------------------------------------------------------------------- main
if __name__ == "__main__":
    key = jax.random.PRNGKey(0)
    k_param, k_x = jax.random.split(key)

    input_dim = 32        # conv1_out = 7, conv2_out = 2, dense in_features = 2*2*32 = 128
    batch = 2
    x = jax.random.normal(k_x, (batch, 3, input_dim, input_dim), jnp.float32)  # NCHW like torch
    params = init_params(k_param, input_dim)
    packed = pack_params(params, input_dim, batch)

    for use_batch_norm in (False, True):
        q = dqn_forward(packed, x, input_dim=input_dim, use_batch_norm=use_batch_norm)
        q = jax.block_until_ready(q)
        assert q.shape == (batch, 4) and q.dtype == jnp.float32
        q_ref = dqn_reference(params, x, use_batch_norm)
        if not bool(jnp.allclose(q, q_ref, atol=1e-4, rtol=1e-4)):
            raise AssertionError("Pallas DQN output mismatch vs JAX reference "
                                 f"(use_batch_norm={use_batch_norm})")

    print("KERNEL_OK")
</pallas_src>

<mosaic_0001>
module attributes {stable_mosaic.version = 11 : i64} {
  func.func @_dqn_kernel(%arg0: i32, %arg1: memref<98x192xf32, #tpu.memory_space<vmem>>, %arg2: memref<192x16xf32, #tpu.memory_space<vmem>>, %arg3: memref<8x256xf32, #tpu.memory_space<vmem>>, %arg4: memref<128x98xf32, #tpu.memory_space<vmem>>, %arg5: memref<16x16x32xf32, #tpu.memory_space<vmem>>, %arg6: memref<4x32x256xf32, #tpu.memory_space<vmem>>, %arg7: memref<256x128xf32, #tpu.memory_space<vmem>>, %arg8: memref<2x128xf32, #tpu.memory_space<vmem>>) attributes {dimension_semantics = [#tpu.dimension_semantics<arbitrary>], iteration_bounds = array<i64: 1>, scalar_prefetch = 0 : i64, scratch_operands = 0 : i64, tpu.core_type = #tpu.core_type<tc>, window_params = [{pipeline_mode = #tpu.pipeline_mode<synchronous>, transform_indices = @transform_0, window_bounds = array<i64: 98, 192>}, {pipeline_mode = #tpu.pipeline_mode<synchronous>, transform_indices = @transform_1, window_bounds = array<i64: 192, 16>}, {pipeline_mode = #tpu.pipeline_mode<synchronous>, transform_indices = @transform_2, window_bounds = array<i64: 8, 256>}, {pipeline_mode = #tpu.pipeline_mode<synchronous>, transform_indices = @transform_3, window_bounds = array<i64: 128, 98>}, {pipeline_mode = #tpu.pipeline_mode<synchronous>, transform_indices = @transform_4, window_bounds = array<i64: 16, 16, 32>}, {pipeline_mode = #tpu.pipeline_mode<synchronous>, transform_indices = @transform_5, window_bounds = array<i64: 4, 32, 256>}, {pipeline_mode = #tpu.pipeline_mode<synchronous>, transform_indices = @transform_6, window_bounds = array<i64: 256, 128>}, {pipeline_mode = #tpu.pipeline_mode<synchronous>, transform_indices = @transform_7, window_bounds = array<i64: 2, 128>}]} {
    %c0 = arith.constant 0 : index
    %c0_0 = arith.constant 0 : index
    %0 = vector.load %arg3[%c0, %c0_0] : memref<8x256xf32, #tpu.memory_space<vmem>>, vector<8x256xf32>
    %1 = vector.extract_strided_slice %0 {offsets = [0, 0], sizes = [1, 16], strides = [1, 1]} : vector<8x256xf32> to vector<1x16xf32>
    %2 = vector.extract_strided_slice %0 {offsets = [3, 0], sizes = [1, 32], strides = [1, 1]} : vector<8x256xf32> to vector<1x32xf32>
    %3 = vector.extract_strided_slice %0 {offsets = [6, 0], sizes = [1, 128], strides = [1, 1]} : vector<8x256xf32> to vector<1x128xf32>
    %4 = vector.extract_strided_slice %0 {offsets = [7, 0], sizes = [1, 256], strides = [1, 1]} : vector<8x256xf32> to vector<1x256xf32>
    %c0_1 = arith.constant 0 : index
    %c0_2 = arith.constant 0 : index
    %5 = vector.load %arg1[%c0_1, %c0_2] : memref<98x192xf32, #tpu.memory_space<vmem>>, vector<98x192xf32>
    %c0_3 = arith.constant 0 : index
    %c0_4 = arith.constant 0 : index
    %6 = vector.load %arg2[%c0_3, %c0_4] : memref<192x16xf32, #tpu.memory_space<vmem>>, vector<192x16xf32>
    %cst = arith.constant dense<0.000000e+00> : vector<98x16xf32>
    %7 = tpu.matmul %5, %6, %cst {dimension_numbers = #tpu.dot_dimension_numbers<[1], [0], [0], [1], [0, 0, 1, 1], [], []>} : vector<98x192xf32>, vector<192x16xf32>, vector<98x16xf32> -> vector<98x16xf32>
    %8 = vector.broadcast %1 : vector<1x16xf32> to vector<98x16xf32>
    %9 = arith.addf %7, %8 : vector<98x16xf32>
    %cst_5 = arith.constant 0.000000e+00 : f32
    %10 = vector.broadcast %cst_5 : f32 to vector<98x16xf32>
    %11 = arith.maximumf %9, %10 : vector<98x16xf32>
    %c0_6 = arith.constant 0 : index
    %c0_7 = arith.constant 0 : index
    %12 = vector.load %arg4[%c0_6, %c0_7] : memref<128x98xf32, #tpu.memory_space<vmem>>, vector<128x98xf32>
    %cst_8 = arith.constant dense<0.000000e+00> : vector<128x16xf32>
    %13 = tpu.matmul %12, %11, %cst_8 {dimension_numbers = #tpu.dot_dimension_numbers<[1], [0], [0], [1], [0, 0, 1, 1], [], []>} : vector<128x98xf32>, vector<98x16xf32>, vector<128x16xf32> -> vector<128x16xf32>
    %14 = vector.extract_strided_slice %13 {offsets = [0, 0], sizes = [8, 16], strides = [1, 1]} : vector<128x16xf32> to vector<8x16xf32>
    %c0_9 = arith.constant 0 : index
    %c0_10 = arith.constant 0 : index
    %c0_11 = arith.constant 0 : index
    %15 = vector.load %arg5[%c0_9, %c0_10, %c0_11] : memref<16x16x32xf32, #tpu.memory_space<vmem>>, vector<1x16x32xf32>
    %16 = vector.shape_cast %15 : vector<1x16x32xf32> to vector<16x32xf32>
    %cst_12 = arith.constant dense<0.000000e+00> : vector<8x32xf32>
    %17 = tpu.matmul %14, %16, %cst_12 {dimension_numbers = #tpu.dot_dimension_numbers<[1], [0], [0], [1], [0, 0, 1, 1], [], []>} : vector<8x16xf32>, vector<16x32xf32>, vector<8x32xf32> -> vector<8x32xf32>
    %18 = vector.extract_strided_slice %13 {offsets = [8, 0], sizes = [8, 16], strides = [1, 1]} : vector<128x16xf32> to vector<8x16xf32>
    %c1 = arith.constant 1 : index
    %c0_13 = arith.constant 0 : index
    %c0_14 = arith.constant 0 : index
    %19 = vector.load %arg5[%c1, %c0_13, %c0_14] : memref<16x16x32xf32, #tpu.memory_space<vmem>>, vector<1x16x32xf32>
    %20 = vector.shape_cast %19 : vector<1x16x32xf32> to vector<16x32xf32>
    %cst_15 = arith.constant dense<0.000000e+00> : vector<8x32xf32>
    %21 = tpu.matmul %18, %20, %cst_15 {dimension_numbers = #tpu.dot_dimension_numbers<[1], [0], [0], [1], [0, 0, 1, 1], [], []>} : vector<8x16xf32>, vector<16x32xf32>, vector<8x32xf32> -> vector<8x32xf32>
    %22 = arith.addf %17, %21 : vector<8x32xf32>
    %23 = vector.extract_strided_slice %13 {offsets = [16, 0], sizes = [8, 16], strides = [1, 1]} : vector<128x16xf32> to vector<8x16xf32>
    %c2 = arith.constant 2 : index
    %c0_16 = arith.constant 0 : index
    %c0_17 = arith.constant 0 : index
    %24 = vector.load %arg5[%c2, %c0_16, %c0_17] : memref<16x16x32xf32, #tpu.memory_space<vmem>>, vector<1x16x32xf32>
    %25 = vector.shape_cast %24 : vector<1x16x32xf32> to vector<16x32xf32>
    %cst_18 = arith.constant dense<0.000000e+00> : vector<8x32xf32>
    %26 = tpu.matmul %23, %25, %cst_18 {dimension_numbers = #tpu.dot_dimension_numbers<[1], [0], [0], [1], [0, 0, 1, 1], [], []>} : vector<8x16xf32>, vector<16x32xf32>, vector<8x32xf32> -> vector<8x32xf32>
    %27 = arith.addf %22, %26 : vector<8x32xf32>
    %28 = vector.extract_strided_slice %13 {offsets = [24, 0], sizes = [8, 16], strides = [1, 1]} : vector<128x16xf32> to vector<8x16xf32>
    %c3 = arith.constant 3 : index
    %c0_19 = arith.constant 0 : index
    %c0_20 = arith.constant 0 : index
    %29 = vector.load %arg5[%c3, %c0_19, %c0_20] : memref<16x16x32xf32, #tpu.memory_space<vmem>>, vector<1x16x32xf32>
    %30 = vector.shape_cast %29 : vector<1x16x32xf32> to vector<16x32xf32>
    %cst_21 = arith.constant dense<0.000000e+00> : vector<8x32xf32>
    %31 = tpu.matmul %28, %30, %cst_21 {dimension_numbers = #tpu.dot_dimension_numbers<[1], [0], [0], [1], [0, 0, 1, 1], [], []>} : vector<8x16xf32>, vector<16x32xf32>, vector<8x32xf32> -> vector<8x32xf32>
    %32 = arith.addf %27, %31 : vector<8x32xf32>
    %33 = vector.extract_strided_slice %13 {offsets = [32, 0], sizes = [8, 16], strides = [1, 1]} : vector<128x16xf32> to vector<8x16xf32>
    %c4 = arith.constant 4 : index
    %c0_22 = arith.constant 0 : index
    %c0_23 = arith.constant 0 : index
    %34 = vector.load %arg5[%c4, %c0_22, %c0_23] : memref<16x16x32xf32, #tpu.memory_space<vmem>>, vector<1x16x32xf32>
    %35 = vector.shape_cast %34 : vector<1x16x32xf32> to vector<16x32xf32>
    %cst_24 = arith.constant dense<0.000000e+00> : vector<8x32xf32>
    %36 = tpu.matmul %33, %35, %cst_24 {dimension_numbers = #tpu.dot_dimension_numbers<[1], [0], [0], [1], [0, 0, 1, 1], [], []>} : vector<8x16xf32>, vector<16x32xf32>, vector<8x32xf32> -> vector<8x32xf32>
    %37 = arith.addf %32, %36 : vector<8x32xf32>
    %38 = vector.extract_strided_slice %13 {offsets = [40, 0], sizes = [8, 16], strides = [1, 1]} : vector<128x16xf32> to vector<8x16xf32>
    %c5 = arith.constant 5 : index
    %c0_25 = arith.constant 0 : index
    %c0_26 = arith.constant 0 : index
    %39 = vector.load %arg5[%c5, %c0_25, %c0_26] : memref<16x16x32xf32, #tpu.memory_space<vmem>>, vector<1x16x32xf32>
    %40 = vector.shape_cast %39 : vector<1x16x32xf32> to vector<16x32xf32>
    %cst_27 = arith.constant dense<0.000000e+00> : vector<8x32xf32>
    %41 = tpu.matmul %38, %40, %cst_27 {dimension_numbers = #tpu.dot_dimension_numbers<[1], [0], [0], [1], [0, 0, 1, 1], [], []>} : vector<8x16xf32>, vector<16x32xf32>, vector<8x32xf32> -> vector<8x32xf32>
    %42 = arith.addf %37, %41 : vector<8x32xf32>
    %43 = vector.extract_strided_slice %13 {offsets = [48, 0], sizes = [8, 16], strides = [1, 1]} : vector<128x16xf32> to vector<8x16xf32>
    %c6 = arith.constant 6 : index
    %c0_28 = arith.constant 0 : index
    %c0_29 = arith.constant 0 : index
    %44 = vector.load %arg5[%c6, %c0_28, %c0_29] : memref<16x16x32xf32, #tpu.memory_space<vmem>>, vector<1x16x32xf32>
    %45 = vector.shape_cast %44 : vector<1x16x32xf32> to vector<16x32xf32>
    %cst_30 = arith.constant dense<0.000000e+00> : vector<8x32xf32>
    %46 = tpu.matmul %43, %45, %cst_30 {dimension_numbers = #tpu.dot_dimension_numbers<[1], [0], [0], [1], [0, 0, 1, 1], [], []>} : vector<8x16xf32>, vector<16x32xf32>, vector<8x32xf32> -> vector<8x32xf32>
    %47 = arith.addf %42, %46 : vector<8x32xf32>
    %48 = vector.extract_strided_slice %13 {offsets = [56, 0], sizes = [8, 16], strides = [1, 1]} : vector<128x16xf32> to vector<8x16xf32>
    %c7 = arith.constant 7 : index
    %c0_31 = arith.constant 0 : index
    %c0_32 = arith.constant 0 : index
    %49 = vector.load %arg5[%c7, %c0_31, %c0_32] : memref<16x16x32xf32, #tpu.memory_space<vmem>>, vector<1x16x32xf32>
    %50 = vector.shape_cast %49 : vector<1x16x32xf32> to vector<16x32xf32>
    %cst_33 = arith.constant dense<0.000000e+00> : vector<8x32xf32>
    %51 = tpu.matmul %48, %50, %cst_33 {dimension_numbers = #tpu.dot_dimension_numbers<[1], [0], [0], [1], [0, 0, 1, 1], [], []>} : vector<8x16xf32>, vector<16x32xf32>, vector<8x32xf32> -> vector<8x32xf32>
    %52 = arith.addf %47, %51 : vector<8x32xf32>
    %53 = vector.extract_strided_slice %13 {offsets = [64, 0], sizes = [8, 16], strides = [1, 1]} : vector<128x16xf32> to vector<8x16xf32>
    %c8 = arith.constant 8 : index
    %c0_34 = arith.constant 0 : index
    %c0_35 = arith.constant 0 : index
    %54 = vector.load %arg5[%c8, %c0_34, %c0_35] : memref<16x16x32xf32, #tpu.memory_space<vmem>>, vector<1x16x32xf32>
    %55 = vector.shape_cast %54 : vector<1x16x32xf32> to vector<16x32xf32>
    %cst_36 = arith.constant dense<0.000000e+00> : vector<8x32xf32>
    %56 = tpu.matmul %53, %55, %cst_36 {dimension_numbers = #tpu.dot_dimension_numbers<[1], [0], [0], [1], [0, 0, 1, 1], [], []>} : vector<8x16xf32>, vector<16x32xf32>, vector<8x32xf32> -> vector<8x32xf32>
    %57 = arith.addf %52, %56 : vector<8x32xf32>
    %58 = vector.extract_strided_slice %13 {offsets = [72, 0], sizes = [8, 16], strides = [1, 1]} : vector<128x16xf32> to vector<8x16xf32>
    %c9 = arith.constant 9 : index
    %c0_37 = arith.constant 0 : index
    %c0_38 = arith.constant 0 : index
    %59 = vector.load %arg5[%c9, %c0_37, %c0_38] : memref<16x16x32xf32, #tpu.memory_space<vmem>>, vector<1x16x32xf32>
    %60 = vector.shape_cast %59 : vector<1x16x32xf32> to vector<16x32xf32>
    %cst_39 = arith.constant dense<0.000000e+00> : vector<8x32xf32>
    %61 = tpu.matmul %58, %60, %cst_39 {dimension_numbers = #tpu.dot_dimension_numbers<[1], [0], [0], [1], [0, 0, 1, 1], [], []>} : vector<8x16xf32>, vector<16x32xf32>, vector<8x32xf32> -> vector<8x32xf32>
    %62 = arith.addf %57, %61 : vector<8x32xf32>
    %63 = vector.extract_strided_slice %13 {offsets = [80, 0], sizes = [8, 16], strides = [1, 1]} : vector<128x16xf32> to vector<8x16xf32>
    %c10 = arith.constant 10 : index
    %c0_40 = arith.constant 0 : index
    %c0_41 = arith.constant 0 : index
    %64 = vector.load %arg5[%c10, %c0_40, %c0_41] : memref<16x16x32xf32, #tpu.memory_space<vmem>>, vector<1x16x32xf32>
    %65 = vector.shape_cast %64 : vector<1x16x32xf32> to vector<16x32xf32>
    %cst_42 = arith.constant dense<0.000000e+00> : vector<8x32xf32>
    %66 = tpu.matmul %63, %65, %cst_42 {dimension_numbers = #tpu.dot_dimension_numbers<[1], [0], [0], [1], [0, 0, 1, 1], [], []>} : vector<8x16xf32>, vector<16x32xf32>, vector<8x32xf32> -> vector<8x32xf32>
    %67 = arith.addf %62, %66 : vector<8x32xf32>
    %68 = vector.extract_strided_slice %13 {offsets = [88, 0], sizes = [8, 16], strides = [1, 1]} : vector<128x16xf32> to vector<8x16xf32>
    %c11 = arith.constant 11 : index
    %c0_43 = arith.constant 0 : index
    %c0_44 = arith.constant 0 : index
    %69 = vector.load %arg5[%c11, %c0_43, %c0_44] : memref<16x16x32xf32, #tpu.memory_space<vmem>>, vector<1x16x32xf32>
    %70 = vector.shape_cast %69 : vector<1x16x32xf32> to vector<16x32xf32>
    %cst_45 = arith.constant dense<0.000000e+00> : vector<8x32xf32>
    %71 = tpu.matmul %68, %70, %cst_45 {dimension_numbers = #tpu.dot_dimension_numbers<[1], [0], [0], [1], [0, 0, 1, 1], [], []>} : vector<8x16xf32>, vector<16x32xf32>, vector<8x32xf32> -> vector<8x32xf32>
    %72 = arith.addf %67, %71 : vector<8x32xf32>
    %73 = vector.extract_strided_slice %13 {offsets = [96, 0], sizes = [8, 16], strides = [1, 1]} : vector<128x16xf32> to vector<8x16xf32>
    %c12 = arith.constant 12 : index
    %c0_46 = arith.constant 0 : index
    %c0_47 = arith.constant 0 : index
    %74 = vector.load %arg5[%c12, %c0_46, %c0_47] : memref<16x16x32xf32, #tpu.memory_space<vmem>>, vector<1x16x32xf32>
    %75 = vector.shape_cast %74 : vector<1x16x32xf32> to vector<16x32xf32>
    %cst_48 = arith.constant dense<0.000000e+00> : vector<8x32xf32>
    %76 = tpu.matmul %73, %75, %cst_48 {dimension_numbers = #tpu.dot_dimension_numbers<[1], [0], [0], [1], [0, 0, 1, 1], [], []>} : vector<8x16xf32>, vector<16x32xf32>, vector<8x32xf32> -> vector<8x32xf32>
    %77 = arith.addf %72, %76 : vector<8x32xf32>
    %78 = vector.extract_strided_slice %13 {offsets = [104, 0], sizes = [8, 16], strides = [1, 1]} : vector<128x16xf32> to vector<8x16xf32>
    %c13 = arith.constant 13 : index
    %c0_49 = arith.constant 0 : index
    %c0_50 = arith.constant 0 : index
    %79 = vector.load %arg5[%c13, %c0_49, %c0_50] : memref<16x16x32xf32, #tpu.memory_space<vmem>>, vector<1x16x32xf32>
    %80 = vector.shape_cast %79 : vector<1x16x32xf32> to vector<16x32xf32>
    %cst_51 = arith.constant dense<0.000000e+00> : vector<8x32xf32>
    %81 = tpu.matmul %78, %80, %cst_51 {dimension_numbers = #tpu.dot_dimension_numbers<[1], [0], [0], [1], [0, 0, 1, 1], [], []>} : vector<8x16xf32>, vector<16x32xf32>, vector<8x32xf32> -> vector<8x32xf32>
    %82 = arith.addf %77, %81 : vector<8x32xf32>
    %83 = vector.extract_strided_slice %13 {offsets = [112, 0], sizes = [8, 16], strides = [1, 1]} : vector<128x16xf32> to vector<8x16xf32>
    %c14 = arith.constant 14 : index
    %c0_52 = arith.constant 0 : index
    %c0_53 = arith.constant 0 : index
    %84 = vector.load %arg5[%c14, %c0_52, %c0_53] : memref<16x16x32xf32, #tpu.memory_space<vmem>>, vector<1x16x32xf32>
    %85 = vector.shape_cast %84 : vector<1x16x32xf32> to vector<16x32xf32>
    %cst_54 = arith.constant dense<0.000000e+00> : vector<8x32xf32>
    %86 = tpu.matmul %83, %85, %cst_54 {dimension_numbers = #tpu.dot_dimension_numbers<[1], [0], [0], [1], [0, 0, 1, 1], [], []>} : vector<8x16xf32>, vector<16x32xf32>, vector<8x32xf32> -> vector<8x32xf32>
    %87 = arith.addf %82, %86 : vector<8x32xf32>
    %88 = vector.extract_strided_slice %13 {offsets = [120, 0], sizes = [8, 16], strides = [1, 1]} : vector<128x16xf32> to vector<8x16xf32>
    %c15 = arith.constant 15 : index
    %c0_55 = arith.constant 0 : index
    %c0_56 = arith.constant 0 : index
    %89 = vector.load %arg5[%c15, %c0_55, %c0_56] : memref<16x16x32xf32, #tpu.memory_space<vmem>>, vector<1x16x32xf32>
    %90 = vector.shape_cast %89 : vector<1x16x32xf32> to vector<16x32xf32>
    %cst_57 = arith.constant dense<0.000000e+00> : vector<8x32xf32>
    %91 = tpu.matmul %88, %90, %cst_57 {dimension_numbers = #tpu.dot_dimension_numbers<[1], [0], [0], [1], [0, 0, 1, 1], [], []>} : vector<8x16xf32>, vector<16x32xf32>, vector<8x32xf32> -> vector<8x32xf32>
    %92 = arith.addf %87, %91 : vector<8x32xf32>
    %93 = vector.broadcast %2 : vector<1x32xf32> to vector<8x32xf32>
    %94 = arith.addf %92, %93 : vector<8x32xf32>
    %cst_58 = arith.constant 0.000000e+00 : f32
    %95 = vector.broadcast %cst_58 : f32 to vector<8x32xf32>
    %96 = arith.maximumf %94, %95 : vector<8x32xf32>
    %97 = vector.extract_strided_slice %96 {offsets = [0, 0], sizes = [2, 32], strides = [1, 1]} : vector<8x32xf32> to vector<2x32xf32>
    %c0_59 = arith.constant 0 : index
    %c0_60 = arith.constant 0 : index
    %c0_61 = arith.constant 0 : index
    %98 = vector.load %arg6[%c0_59, %c0_60, %c0_61] : memref<4x32x256xf32, #tpu.memory_space<vmem>>, vector<1x32x256xf32>
    %99 = vector.shape_cast %98 : vector<1x32x256xf32> to vector<32x256xf32>
    %cst_62 = arith.constant dense<0.000000e+00> : vector<2x256xf32>
    %100 = tpu.matmul %97, %99, %cst_62 {dimension_numbers = #tpu.dot_dimension_numbers<[1], [0], [0], [1], [0, 0, 1, 1], [], []>} : vector<2x32xf32>, vector<32x256xf32>, vector<2x256xf32> -> vector<2x256xf32>
    %101 = vector.extract_strided_slice %96 {offsets = [2, 0], sizes = [2, 32], strides = [1, 1]} : vector<8x32xf32> to vector<2x32xf32>
    %c1_63 = arith.constant 1 : index
    %c0_64 = arith.constant 0 : index
    %c0_65 = arith.constant 0 : index
    %102 = vector.load %arg6[%c1_63, %c0_64, %c0_65] : memref<4x32x256xf32, #tpu.memory_space<vmem>>, vector<1x32x256xf32>
    %103 = vector.shape_cast %102 : vector<1x32x256xf32> to vector<32x256xf32>
    %cst_66 = arith.constant dense<0.000000e+00> : vector<2x256xf32>
    %104 = tpu.matmul %101, %103, %cst_66 {dimension_numbers = #tpu.dot_dimension_numbers<[1], [0], [0], [1], [0, 0, 1, 1], [], []>} : vector<2x32xf32>, vector<32x256xf32>, vector<2x256xf32> -> vector<2x256xf32>
    %105 = arith.addf %100, %104 : vector<2x256xf32>
    %106 = vector.extract_strided_slice %96 {offsets = [4, 0], sizes = [2, 32], strides = [1, 1]} : vector<8x32xf32> to vector<2x32xf32>
    %c2_67 = arith.constant 2 : index
    %c0_68 = arith.constant 0 : index
    %c0_69 = arith.constant 0 : index
    %107 = vector.load %arg6[%c2_67, %c0_68, %c0_69] : memref<4x32x256xf32, #tpu.memory_space<vmem>>, vector<1x32x256xf32>
    %108 = vector.shape_cast %107 : vector<1x32x256xf32> to vector<32x256xf32>
    %cst_70 = arith.constant dense<0.000000e+00> : vector<2x256xf32>
    %109 = tpu.matmul %106, %108, %cst_70 {dimension_numbers = #tpu.dot_dimension_numbers<[1], [0], [0], [1], [0, 0, 1, 1], [], []>} : vector<2x32xf32>, vector<32x256xf32>, vector<2x256xf32> -> vector<2x256xf32>
    %110 = arith.addf %105, %109 : vector<2x256xf32>
    %111 = vector.extract_strided_slice %96 {offsets = [6, 0], sizes = [2, 32], strides = [1, 1]} : vector<8x32xf32> to vector<2x32xf32>
    %c3_71 = arith.constant 3 : index
    %c0_72 = arith.constant 0 : index
    %c0_73 = arith.constant 0 : index
    %112 = vector.load %arg6[%c3_71, %c0_72, %c0_73] : memref<4x32x256xf32, #tpu.memory_space<vmem>>, vector<1x32x256xf32>
    %113 = vector.shape_cast %112 : vector<1x32x256xf32> to vector<32x256xf32>
    %cst_74 = arith.constant dense<0.000000e+00> : vector<2x256xf32>
    %114 = tpu.matmul %111, %113, %cst_74 {dimension_numbers = #tpu.dot_dimension_numbers<[1], [0], [0], [1], [0, 0, 1, 1], [], []>} : vector<2x32xf32>, vector<32x256xf32>, vector<2x256xf32> -> vector<2x256xf32>
    %115 = arith.addf %110, %114 : vector<2x256xf32>
    %116 = vector.broadcast %4 : vector<1x256xf32> to vector<2x256xf32>
    %117 = arith.addf %115, %116 : vector<2x256xf32>
    %cst_75 = arith.constant 0.000000e+00 : f32
    %118 = vector.broadcast %cst_75 : f32 to vector<2x256xf32>
    %119 = arith.maximumf %117, %118 : vector<2x256xf32>
    %c0_76 = arith.constant 0 : index
    %c0_77 = arith.constant 0 : index
    %120 = vector.load %arg7[%c0_76, %c0_77] : memref<256x128xf32, #tpu.memory_space<vmem>>, vector<256x128xf32>
    %cst_78 = arith.constant dense<0.000000e+00> : vector<2x128xf32>
    %121 = tpu.matmul %119, %120, %cst_78 {dimension_numbers = #tpu.dot_dimension_numbers<[1], [0], [0], [1], [0, 0, 1, 1], [], []>} : vector<2x256xf32>, vector<256x128xf32>, vector<2x128xf32> -> vector<2x128xf32>
    %122 = vector.broadcast %3 : vector<1x128xf32> to vector<2x128xf32>
    %123 = arith.addf %121, %122 : vector<2x128xf32>
    %c0_79 = arith.constant 0 : index
    %c0_80 = arith.constant 0 : index
    %124 = vector.load %arg8[%c0_79, %c0_80] : memref<2x128xf32, #tpu.memory_space<vmem>>, vector<2x128xf32>
    tpu.vector_store %arg8[%c0_79, %c0_80], %123 {strides = array<i32>} : memref<2x128xf32, #tpu.memory_space<vmem>>, vector<2x128xf32>,
    return
  }
  func.func @transform_0(%arg0: i32) -> (i32, i32) {
    %c0_i32 = arith.constant 0 : i32
    %c0_i32_0 = arith.constant 0 : i32
    %c0_i32_1 = arith.constant 0 : i32
    return %c0_i32, %c0_i32_0 : i32, i32
  }
  func.func @transform_1(%arg0: i32) -> (i32, i32) {
    %c0_i32 = arith.constant 0 : i32
    %c0_i32_0 = arith.constant 0 : i32
    %c0_i32_1 = arith.constant 0 : i32
    return %c0_i32, %c0_i32_0 : i32, i32
  }
  func.func @transform_2(%arg0: i32) -> (i32, i32) {
    %c0_i32 = arith.constant 0 : i32
    %c0_i32_0 = arith.constant 0 : i32
    %c0_i32_1 = arith.constant 0 : i32
    return %c0_i32, %c0_i32_0 : i32, i32
  }
  func.func @transform_3(%arg0: i32) -> (i32, i32) {
    %c0_i32 = arith.constant 0 : i32
    %c0_i32_0 = arith.constant 0 : i32
    %c0_i32_1 = arith.constant 0 : i32
    return %c0_i32, %c0_i32_0 : i32, i32
  }
  func.func @transform_4(%arg0: i32) -> (i32, i32, i32) {
    %c0_i32 = arith.constant 0 : i32
    %c0_i32_0 = arith.constant 0 : i32
    %c0_i32_1 = arith.constant 0 : i32
    %c0_i32_2 = arith.constant 0 : i32
    return %c0_i32, %c0_i32_0, %c0_i32_1 : i32, i32, i32
  }
  func.func @transform_5(%arg0: i32) -> (i32, i32, i32) {
    %c0_i32 = arith.constant 0 : i32
    %c0_i32_0 = arith.constant 0 : i32
    %c0_i32_1 = arith.constant 0 : i32
    %c0_i32_2 = arith.constant 0 : i32
    return %c0_i32, %c0_i32_0, %c0_i32_1 : i32, i32, i32
  }
  func.func @transform_6(%arg0: i32) -> (i32, i32) {
    %c0_i32 = arith.constant 0 : i32
    %c0_i32_0 = arith.constant 0 : i32
    %c0_i32_1 = arith.constant 0 : i32
    return %c0_i32, %c0_i32_0 : i32, i32
  }
  func.func @transform_7(%arg0: i32) -> (i32, i32) {
    %c0_i32 = arith.constant 0 : i32
    %c0_i32_0 = arith.constant 0 : i32
    %c0_i32_1 = arith.constant 0 : i32
    return %c0_i32, %c0_i32_0 : i32, i32
  }
}

</mosaic_0001>

<llo_original>
// kernel: dqn_forward.1
$region0: #{dqn_forward.1}
  #allocation0 [shape = 'u32[]', space=smem, size = 0x4, offset = 0x4, fixed_abs, tag = 'smem constant byte address 0x4 - core index']
  #allocation1 [shape = 'u32[72,128]{1,0:T(1,128)}', space=vmem, size = 0x9000, scoped, tag = 'internal scratch']
  %s0 = inlined_call_operand.vmem [shape: f32[98,192], index: 0, kind: input, shape index: {}]
  %s1 = inlined_call_operand.vmem [shape: f32[192,16], index: 1, kind: input, shape index: {}]
  %s2 = inlined_call_operand.vmem [shape: f32[8,256], index: 2, kind: input, shape index: {}]
  %s3 = inlined_call_operand.vmem [shape: f32[128,98], index: 3, kind: input, shape index: {}]
  %s4 = inlined_call_operand.vmem [shape: f32[16,16,32], index: 4, kind: input, shape index: {}]
  %s5 = inlined_call_operand.vmem [shape: f32[4,32,256], index: 5, kind: input, shape index: {}]
  %s6 = inlined_call_operand.vmem [shape: f32[256,128], index: 6, kind: input, shape index: {}]
  %s7 = inlined_call_operand.hbm [shape: f32[2,128], index: 7, kind: output, shape index: {}]
  %s8 = sld [smem:[#allocation0]]
  $region38: #{dqn_forward.1} parent=0
    _
  %s10 = ssub.s32 1, %s8
  %s11 = scalar_select 0, %s10, %s8
  $region1: #{dqn_forward.1} parent=0
    #allocation2 [shape = 'u8[1024]{0}', space=vmem, size = 0x400, scoped, tag = 'output window, operand 0, single buffered']
    #allocation3 [shape = 's32[1]{0}', space=sflag, size = 0x4, scoped, tag = 'scoped memory for dqn_forward.1']
    %12 = vsyncpa [#allocation3], 0
    // Predicated region
    $region2: #{dqn_forward.1} parent=1 // pred_check
      _
    $region3: #{dqn_forward.1} parent=1 // pred_check_branch
      %14 = sbr.rel (0) target = $region5
    $region4: #{dqn_forward.1} parent=1 // pred_region
      _
    $region5: #{dqn_forward.1} parent=1 // pred_fallthru
      _
    // Predicated region
    $region6: #{dqn_forward.1} parent=1 // pred_check
      _
    $region7: #{dqn_forward.1} parent=1 // pred_check_branch
      %16 = sbr.rel (0) target = $region9
    $region8: #{dqn_forward.1} parent=1 // pred_region
      _
    $region9: #{dqn_forward.1} parent=1 // pred_fallthru
      _
    // Predicated region
    $region10: #{dqn_forward.1} parent=1 // pred_check
      _
    $region11: #{dqn_forward.1} parent=1 // pred_check_branch
      %18 = sbr.rel (0) target = $region13
    $region12: #{dqn_forward.1} parent=1 // pred_region
      _
    $region13: #{dqn_forward.1} parent=1 // pred_fallthru
      _
    // Predicated region
    $region14: #{dqn_forward.1} parent=1 // pred_check
      _
    $region15: #{dqn_forward.1} parent=1 // pred_check_branch
      %20 = sbr.rel (0) target = $region17
    $region16: #{dqn_forward.1} parent=1 // pred_region
      _
    $region17: #{dqn_forward.1} parent=1 // pred_fallthru
      _
    // Predicated region
    $region18: #{dqn_forward.1} parent=1 // pred_check
      _
    $region19: #{dqn_forward.1} parent=1 // pred_check_branch
      %22 = sbr.rel (0) target = $region21
    $region20: #{dqn_forward.1} parent=1 // pred_region
      _
    $region21: #{dqn_forward.1} parent=1 // pred_fallthru
      _
    // Predicated region
    $region22: #{dqn_forward.1} parent=1 // pred_check
      _
    $region23: #{dqn_forward.1} parent=1 // pred_check_branch
      %24 = sbr.rel (0) target = $region25
    $region24: #{dqn_forward.1} parent=1 // pred_region
      _
    $region25: #{dqn_forward.1} parent=1 // pred_fallthru
      _
    // Predicated region
    $region26: #{dqn_forward.1} parent=1 // pred_check
      _
    $region27: #{dqn_forward.1} parent=1 // pred_check_branch
      %26 = sbr.rel (0) target = $region29
    $region28: #{dqn_forward.1} parent=1 // pred_region
      _
    $region29: #{dqn_forward.1} parent=1 // pred_fallthru
      _
    %v27 = vld [vmem:[%s2] sm:$0xff]
    %v28 = vld [vmem:[%s2 + $0x8] sm:$0xff]
    %v29 = vld [vmem:[%s0] sm:$0xff]
    %v30 = vld [vmem:[%s0 + $0x8] sm:$0xff]
    %v31 = vld [vmem:[%s0 + $0x10] sm:$0xff]
    %v32 = vld [vmem:[%s0 + $0x18] sm:$0xff]
    %v33 = vld [vmem:[%s0 + $0x20] sm:$0xff]
    %v34 = vld [vmem:[%s0 + $0x28] sm:$0xff]
    %v35 = vld [vmem:[%s0 + $0x30] sm:$0xff]
    %v36 = vld [vmem:[%s0 + $0x38] sm:$0xff]
    %v37 = vld [vmem:[%s0 + $0x40] sm:$0xff]
    %v38 = vld [vmem:[%s0 + $0x48] sm:$0xff]
    %v39 = vld [vmem:[%s0 + $0x50] sm:$0xff]
    %v40 = vld [vmem:[%s0 + $0x58] sm:$0xff]
    %v41 = vld [vmem:[%s0 + $0x60] sm:$0xff]
    %v42 = vld [vmem:[%s0 + $0x68] sm:$0xff]
    %v43 = vld [vmem:[%s0 + $0x70] sm:$0xff]
    %v44 = vld [vmem:[%s0 + $0x78] sm:$0xff]
    %v45 = vld [vmem:[%s0 + $0x80] sm:$0xff]
    %v46 = vld [vmem:[%s0 + $0x88] sm:$0xff]
    %v47 = vld [vmem:[%s0 + $0x90] sm:$0xff]
    %v48 = vld [vmem:[%s0 + $0x98] sm:$0xff]
    %v49 = vld [vmem:[%s0 + $0xa0] sm:$0xff]
    %v50 = vld [vmem:[%s0 + $0xa8] sm:$0xff]
    %v51 = vld [vmem:[%s0 + $0xb0] sm:$0xff]
    %v52 = vld [vmem:[%s0 + $0xb8] sm:$0xff]
    %v53 = vld [vmem:[%s0 + $0xc0] sm:$0x3]
    %v54 = vld [vmem:[%s0 + $0xc8] sm:$0x3]
    %v55 = vld [vmem:[%s1] sm:$0xff]
    %v56 = vld [vmem:[%s1 + $0x8] sm:$0xff]
    %v57 = vld [vmem:[%s1 + $0x10] sm:$0xff]
    %v58 = vld [vmem:[%s1 + $0x18] sm:$0xff]
    %v59 = vld [vmem:[%s1 + $0x20] sm:$0xff]
    %v60 = vld [vmem:[%s1 + $0x28] sm:$0xff]
    %v61 = vld [vmem:[%s1 + $0x30] sm:$0xff]
    %v62 = vld [vmem:[%s1 + $0x38] sm:$0xff]
    %v63 = vld [vmem:[%s1 + $0x40] sm:$0xff]
    %v64 = vld [vmem:[%s1 + $0x48] sm:$0xff]
    %v65 = vld [vmem:[%s1 + $0x50] sm:$0xff]
    %v66 = vld [vmem:[%s1 + $0x58] sm:$0xff]
    %v67 = vld [vmem:[%s1 + $0x60] sm:$0xff]
    %v68 = vld [vmem:[%s1 + $0x68] sm:$0xff]
    %v69 = vld [vmem:[%s1 + $0x70] sm:$0xff]
    %v70 = vld [vmem:[%s1 + $0x78] sm:$0xff]
    %v71 = vld [vmem:[%s1 + $0x80] sm:$0xff]
    %v72 = vld [vmem:[%s1 + $0x88] sm:$0xff]
    %v73 = vld [vmem:[%s1 + $0x90] sm:$0xff]
    %v74 = vld [vmem:[%s1 + $0x98] sm:$0xff]
    %v75 = vld [vmem:[%s1 + $0xa0] sm:$0xff]
    %v76 = vld [vmem:[%s1 + $0xa8] sm:$0xff]
    %v77 = vld [vmem:[%s1 + $0xb0] sm:$0xff]
    %v78 = vld [vmem:[%s1 + $0xb8] sm:$0xff]
    %v79 = vperm.slane %v27, 0
    %vm80 = vcmask 523264
    %v82 = vsel %vm80, %v30, 0
    %v85 = vsel %vm80, %v32, 0
    %v88 = vsel %vm80, %v34, 0
    %v91 = vsel %vm80, %v36, 0
    %v94 = vsel %vm80, %v38, 0
    %v97 = vsel %vm80, %v40, 0
    %v100 = vsel %vm80, %v42, 0
    %v103 = vsel %vm80, %v44, 0
    %v106 = vsel %vm80, %v46, 0
    %v109 = vsel %vm80, %v48, 0
    %v112 = vsel %vm80, %v50, 0
    %v115 = vsel %vm80, %v52, 0
    %v118 = vsel %vm80, %v54, 0
    %120 = vmatpush.msra.mxu0 %v70
    %121 = vmatpush.msra.mxu0 %v69
    %122 = vmatpush.msra.mxu0 %v68
    %123 = vmatpush.msra.mxu0 %v67
    %124 = vmatpush.msra.mxu0 %v66
    %125 = vmatpush.msra.mxu0 %v65
    %126 = vmatpush.msra.mxu0 %v64
    %127 = vmatpush.msra.mxu0 %v63
    %128 = vmatpush.msra.mxu0 %v62
    %129 = vmatpush.msra.mxu0 %v61
    %130 = vmatpush.msra.mxu0 %v60
    %131 = vmatpush.msra.mxu0 %v59
    %132 = vmatpush.msra.mxu0 %v58
    %133 = vmatpush.msra.mxu0 %v57
    %134 = vmatpush.msra.mxu0 %v56
    %135 = vmatpush.msra.mxu0 %v55
    %136 = vmatmul.f32.gmra.mxu0 %v29
    %v137 = vpop.f32.mrf.mxu0
    %v138 = vadd.f32 %v79, %v137
    %139 = vmatmul.f32.gmra.mxu0 %v31
    %v140 = vpop.f32.mrf.mxu0
    %v141 = vadd.f32 %v79, %v140
    %142 = vmatmul.f32.gmra.mxu0 %v33
    %v143 = vpop.f32.mrf.mxu0
    %v144 = vadd.f32 %v79, %v143
    %145 = vmatmul.f32.gmra.mxu0 %v35
    %v146 = vpop.f32.mrf.mxu0
    %v147 = vadd.f32 %v79, %v146
    %148 = vmatmul.f32.gmra.mxu0 %v37
    %v149 = vpop.f32.mrf.mxu0
    %v150 = vadd.f32 %v79, %v149
    %151 = vmatmul.f32.gmra.mxu0 %v39
    %v152 = vpop.f32.mrf.mxu0
    %v153 = vadd.f32 %v79, %v152
    %154 = vmatmul.f32.gmra.mxu0 %v41
    %v155 = vpop.f32.mrf.mxu0
    %v156 = vadd.f32 %v79, %v155
    %157 = vmatmul.f32.gmra.mxu0 %v43
    %v158 = vpop.f32.mrf.mxu0
    %v159 = vadd.f32 %v79, %v158
    %160 = vmatmul.f32.gmra.mxu0 %v45
    %v161 = vpop.f32.mrf.mxu0
    %v162 = vadd.f32 %v79, %v161
    %163 = vmatmul.f32.gmra.mxu0 %v47
    %v164 = vpop.f32.mrf.mxu0
    %v165 = vadd.f32 %v79, %v164
    %166 = vmatmul.f32.gmra.mxu0 %v49
    %v167 = vpop.f32.mrf.mxu0
    %v168 = vadd.f32 %v79, %v167
    %169 = vmatmul.f32.gmra.mxu0 %v51
    %v170 = vpop.f32.mrf.mxu0
    %v171 = vadd.f32 %v79, %v170
    %172 = vmatmul.f32.gmra.mxu0 %v53
    %v173 = vpop.f32.mrf.mxu0
    %v174 = vadd.f32 %v79, %v173
    %175 = vdwg.mxu0
    %176 = vmatpush.msra.mxu0 0.0
    %177 = vmatpush.msra.mxu0 0.0
    %178 = vmatpush.msra.mxu0 0.0
    %179 = vmatpush.msra.mxu0 0.0
    %180 = vmatpush.msra.mxu0 0.0
    %181 = vmatpush.msra.mxu0 0.0
    %182 = vmatpush.msra.mxu0 0.0
    %183 = vmatpush.msra.mxu0 0.0
    %184 = vmatpush.msra.mxu0 %v78
    %185 = vmatpush.msra.mxu0 %v77
    %186 = vmatpush.msra.mxu0 %v76
    %187 = vmatpush.msra.mxu0 %v75
    %188 = vmatpush.msra.mxu0 %v74
    %189 = vmatpush.msra.mxu0 %v73
    %190 = vmatpush.msra.mxu0 %v72
    %191 = vmatpush.msra.mxu0 %v71
    %192 = vmatmul.f32.gmra.mxu0 %v82
    %v193 = vpop.f32.mrf.mxu0
    %v194 = vadd.f32 %v138, %v193
    %195 = vmatmul.f32.gmra.mxu0 %v85
    %v196 = vpop.f32.mrf.mxu0
    %v197 = vadd.f32 %v141, %v196
    %198 = vmatmul.f32.gmra.mxu0 %v88
    %v199 = vpop.f32.mrf.mxu0
    %v200 = vadd.f32 %v144, %v199
    %201 = vmatmul.f32.gmra.mxu0 %v91
    %v202 = vpop.f32.mrf.mxu0
    %v203 = vadd.f32 %v147, %v202
    %204 = vmatmul.f32.gmra.mxu0 %v94
    %v205 = vpop.f32.mrf.mxu0
    %v206 = vadd.f32 %v150, %v205
    %207 = vmatmul.f32.gmra.mxu0 %v97
    %v208 = vpop.f32.mrf.mxu0
    %v209 = vadd.f32 %v153, %v208
    %210 = vmatmul.f32.gmra.mxu0 %v100
    %v211 = vpop.f32.mrf.mxu0
    %v212 = vadd.f32 %v156, %v211
    %213 = vmatmul.f32.gmra.mxu0 %v103
    %v214 = vpop.f32.mrf.mxu0
    %v215 = vadd.f32 %v159, %v214
    %216 = vmatmul.f32.gmra.mxu0 %v106
    %v217 = vpop.f32.mrf.mxu0
    %v218 = vadd.f32 %v162, %v217
    %219 = vmatmul.f32.gmra.mxu0 %v109
    %v220 = vpop.f32.mrf.mxu0
    %v221 = vadd.f32 %v165, %v220
    %222 = vmatmul.f32.gmra.mxu0 %v112
    %v223 = vpop.f32.mrf.mxu0
    %v224 = vadd.f32 %v168, %v223
    %225 = vmatmul.f32.gmra.mxu0 %v115
    %v226 = vpop.f32.mrf.mxu0
    %v227 = vadd.f32 %v171, %v226
    %228 = vmatmul.f32.gmra.mxu0 %v118
    %v229 = vpop.f32.mrf.mxu0
    %v230 = vadd.f32 %v174, %v229
    %231 = vdwg.mxu0
    %v232 = vmax.f32 %v194, 0.0
    %v233 = vmax.f32 %v197, 0.0
    %v234 = vmax.f32 %v200, 0.0
    %v235 = vmax.f32 %v203, 0.0
    %v236 = vmax.f32 %v206, 0.0
    %v237 = vmax.f32 %v209, 0.0
    %v238 = vmax.f32 %v212, 0.0
    %v239 = vmax.f32 %v215, 0.0
    %v240 = vmax.f32 %v218, 0.0
    %v241 = vmax.f32 %v221, 0.0
    %v242 = vmax.f32 %v224, 0.0
    %v243 = vmax.f32 %v227, 0.0
    %v244 = vmax.f32 %v230, 0.0
    %v245 = vld [vmem:[%s3] sm:$0xff]
    %v246 = vld [vmem:[%s3 + $0x8] sm:$0xff]
    %v247 = vld [vmem:[%s3 + $0x10] sm:$0xff]
    %v248 = vld [vmem:[%s3 + $0x18] sm:$0xff]
    %v249 = vld [vmem:[%s3 + $0x20] sm:$0xff]
    %v250 = vld [vmem:[%s3 + $0x28] sm:$0xff]
    %v251 = vld [vmem:[%s3 + $0x30] sm:$0xff]
    %v252 = vld [vmem:[%s3 + $0x38] sm:$0xff]
    %v253 = vld [vmem:[%s3 + $0x40] sm:$0xff]
    %v254 = vld [vmem:[%s3 + $0x48] sm:$0xff]
    %v255 = vld [vmem:[%s3 + $0x50] sm:$0xff]
    %v256 = vld [vmem:[%s3 + $0x58] sm:$0xff]
    %v257 = vld [vmem:[%s3 + $0x60] sm:$0xff]
    %v258 = vld [vmem:[%s3 + $0x68] sm:$0xff]
    %v259 = vld [vmem:[%s3 + $0x70] sm:$0xff]
    %v260 = vld [vmem:[%s3 + $0x78] sm:$0xff]
    %vm261 = vcmask 801792
    %v263 = vsel %vm261, %v245, 0
    %v266 = vsel %vm261, %v246, 0
    %v269 = vsel %vm261, %v247, 0
    %v272 = vsel %vm261, %v248, 0
    %v275 = vsel %vm261, %v249, 0
    %v278 = vsel %vm261, %v250, 0
    %v281 = vsel %vm261, %v251, 0
    %v284 = vsel %vm261, %v252, 0
    %v287 = vsel %vm261, %v253, 0
    %v290 = vsel %vm261, %v254, 0
    %v293 = vsel %vm261, %v255, 0
    %v296 = vsel %vm261, %v256, 0
    %v299 = vsel %vm261, %v257, 0
    %v302 = vsel %vm261, %v258, 0
    %v305 = vsel %vm261, %v259, 0
    %v308 = vsel %vm261, %v260, 0
    %vm310 = vcmask 1041408
    %v312 = vsel %vm310, %v244, 0
    %314 = vmatpush.msra.mxu0 0.0
    %315 = vmatpush.msra.mxu0 0.0
    %316 = vmatpush.msra.mxu0 0.0
    %317 = vmatpush.msra.mxu0 %v312
    %318 = vmatpush.msra.mxu0 %v243
    %319 = vmatpush.msra.mxu0 %v242
    %320 = vmatpush.msra.mxu0 %v241
    %321 = vmatpush.msra.mxu0 %v240
    %322 = vmatpush.msra.mxu0 %v239
    %323 = vmatpush.msra.mxu0 %v238
    %324 = vmatpush.msra.mxu0 %v237
    %325 = vmatpush.msra.mxu0 %v236
    %326 = vmatpush.msra.mxu0 %v235
    %327 = vmatpush.msra.mxu0 %v234
    %328 = vmatpush.msra.mxu0 %v233
    %329 = vmatpush.msra.mxu0 %v232
    %330 = vmatmul.f32.gmra.mxu0 %v263
    %v331 = vpop.f32.mrf.mxu0
    %v332 = vadd.f32 0.0, %v331
    %333 = vmatmul.f32.gmra.mxu0 %v266
    %v334 = vpop.f32.mrf.mxu0
    %v335 = vadd.f32 0.0, %v334
    %336 = vmatmul.f32.gmra.mxu0 %v269
    %v337 = vpop.f32.mrf.mxu0
    %v338 = vadd.f32 0.0, %v337
    %339 = vmatmul.f32.gmra.mxu0 %v272
    %v340 = vpop.f32.mrf.mxu0
    %v341 = vadd.f32 0.0, %v340
    %342 = vmatmul.f32.gmra.mxu0 %v275
    %v343 = vpop.f32.mrf.mxu0
    %v344 = vadd.f32 0.0, %v343
    %345 = vmatmul.f32.gmra.mxu0 %v278
    %v346 = vpop.f32.mrf.mxu0
    %v347 = vadd.f32 0.0, %v346
    %348 = vmatmul.f32.gmra.mxu0 %v281
    %v349 = vpop.f32.mrf.mxu0
    %v350 = vadd.f32 0.0, %v349
    %351 = vmatmul.f32.gmra.mxu0 %v284
    %v352 = vpop.f32.mrf.mxu0
    %v353 = vadd.f32 0.0, %v352
    %354 = vmatmul.f32.gmra.mxu0 %v287
    %v355 = vpop.f32.mrf.mxu0
    %v356 = vadd.f32 0.0, %v355
    %357 = vmatmul.f32.gmra.mxu0 %v290
    %v358 = vpop.f32.mrf.mxu0
    %v359 = vadd.f32 0.0, %v358
    %360 = vmatmul.f32.gmra.mxu0 %v293
    %v361 = vpop.f32.mrf.mxu0
    %v362 = vadd.f32 0.0, %v361
    %363 = vmatmul.f32.gmra.mxu0 %v296
    %v364 = vpop.f32.mrf.mxu0
    %v365 = vadd.f32 0.0, %v364
    %366 = vmatmul.f32.gmra.mxu0 %v299
    %v367 = vpop.f32.mrf.mxu0
    %v368 = vadd.f32 0.0, %v367
    %369 = vmatmul.f32.gmra.mxu0 %v302
    %v370 = vpop.f32.mrf.mxu0
    %v371 = vadd.f32 0.0, %v370
    %372 = vmatmul.f32.gmra.mxu0 %v305
    %v373 = vpop.f32.mrf.mxu0
    %v374 = vadd.f32 0.0, %v373
    %375 = vmatmul.f32.gmra.mxu0 %v308
    %v376 = vpop.f32.mrf.mxu0
    %v377 = vadd.f32 0.0, %v376
    %378 = vdwg.mxu0
    %v379 = vld [vmem:[%s4] sm:$0xff]
    %v380 = vld [vmem:[%s4 + $0x8] sm:$0xff]
    %s381 = scalar_lea.vmem %s4, 16
    %v382 = vld [vmem:[%s381] sm:$0xff]
    %v383 = vld [vmem:[%s381 + $0x8] sm:$0xff]
    %vm384 = vcmask 130048
    %v386 = vsel %vm384, %v335, 0
    %388 = vmatpush.msra.mxu0 0.0
    %389 = vmatpush.msra.mxu0 0.0
    %390 = vmatpush.msra.mxu0 0.0
    %391 = vmatpush.msra.mxu0 0.0
    %392 = vmatpush.msra.mxu0 0.0
    %393 = vmatpush.msra.mxu0 0.0
    %394 = vmatpush.msra.mxu0 0.0
    %395 = vmatpush.msra.mxu0 0.0
    %396 = vmatpush.msra.mxu0 0.0
    %397 = vmatpush.msra.mxu0 0.0
    %398 = vmatpush.msra.mxu0 0.0
    %399 = vmatpush.msra.mxu0 0.0
    %400 = vmatpush.msra.mxu0 0.0
    %401 = vmatpush.msra.mxu0 0.0
    %402 = vmatpush.msra.mxu0 %v383
    %403 = vmatpush.msra.mxu0 %v382
    %404 = vmatmul.f32.gmra.mxu0 %v386
    %v405 = vpop.f32.mrf.mxu0
    %v406 = vadd.f32 0.0, %v405
    %407 = vdwg.mxu0
    %v409 = vsel %vm384, %v332, 0
    %411 = vmatpush.msra.mxu0 0.0
    %412 = vmatpush.msra.mxu0 0.0
    %413 = vmatpush.msra.mxu0 0.0
    %414 = vmatpush.msra.mxu0 0.0
    %415 = vmatpush.msra.mxu0 0.0
    %416 = vmatpush.msra.mxu0 0.0
    %417 = vmatpush.msra.mxu0 0.0
    %418 = vmatpush.msra.mxu0 0.0
    %419 = vmatpush.msra.mxu0 0.0
    %420 = vmatpush.msra.mxu0 0.0
    %421 = vmatpush.msra.mxu0 0.0
    %422 = vmatpush.msra.mxu0 0.0
    %423 = vmatpush.msra.mxu0 0.0
    %424 = vmatpush.msra.mxu0 0.0
    %425 = vmatpush.msra.mxu0 %v380
    %426 = vmatpush.msra.mxu0 %v379
    %427 = vmatmul.f32.gmra.mxu0 %v409
    %v428 = vpop.f32.mrf.mxu0
    %v429 = vadd.f32 %v406, %v428
    %430 = vdwg.mxu0
    %s431 = scalar_lea.vmem %s4, 32
    %v432 = vld [vmem:[%s431] sm:$0xff]
    %v433 = vld [vmem:[%s431 + $0x8] sm:$0xff]
    %v435 = vsel %vm384, %v338, 0
    %437 = vmatpush.msra.mxu0 0.0
    %438 = vmatpush.msra.mxu0 0.0
    %439 = vmatpush.msra.mxu0 0.0
    %440 = vmatpush.msra.mxu0 0.0
    %441 = vmatpush.msra.mxu0 0.0
    %442 = vmatpush.msra.mxu0 0.0
    %443 = vmatpush.msra.mxu0 0.0
    %444 = vmatpush.msra.mxu0 0.0
    %445 = vmatpush.msra.mxu0 0.0
    %446 = vmatpush.msra.mxu0 0.0
    %447 = vmatpush.msra.mxu0 0.0
    %448 = vmatpush.msra.mxu0 0.0
    %449 = vmatpush.msra.mxu0 0.0
    %450 = vmatpush.msra.mxu0 0.0
    %451 = vmatpush.msra.mxu0 %v433
    %452 = vmatpush.msra.mxu0 %v432
    %453 = vmatmul.f32.gmra.mxu0 %v435
    %v454 = vpop.f32.mrf.mxu0
    %v455 = vadd.f32 0.0, %v454
    %456 = vdwg.mxu0
    %v457 = vadd.f32 %v429, %v455
    %s458 = scalar_lea.vmem %s4, 48
    %v459 = vld [vmem:[%s458] sm:$0xff]
    %v460 = vld [vmem:[%s458 + $0x8] sm:$0xff]
    %v462 = vsel %vm384, %v341, 0
    %464 = vmatpush.msra.mxu0 0.0
    %465 = vmatpush.msra.mxu0 0.0
    %466 = vmatpush.msra.mxu0 0.0
    %467 = vmatpush.msra.mxu0 0.0
    %468 = vmatpush.msra.mxu0 0.0
    %469 = vmatpush.msra.mxu0 0.0
    %470 = vmatpush.msra.mxu0 0.0
    %471 = vmatpush.msra.mxu0 0.0
    %472 = vmatpush.msra.mxu0 0.0
    %473 = vmatpush.msra.mxu0 0.0
    %474 = vmatpush.msra.mxu0 0.0
    %475 = vmatpush.msra.mxu0 0.0
    %476 = vmatpush.msra.mxu0 0.0
    %477 = vmatpush.msra.mxu0 0.0
    %478 = vmatpush.msra.mxu0 %v460
    %479 = vmatpush.msra.mxu0 %v459
    %480 = vmatmul.f32.gmra.mxu0 %v462
    %v481 = vpop.f32.mrf.mxu0
    %v482 = vadd.f32 0.0, %v481
    %483 = vdwg.mxu0
    %v484 = vadd.f32 %v457, %v482
    %s485 = scalar_lea.vmem %s4, 64
    %v486 = vld [vmem:[%s485] sm:$0xff]
    %v487 = vld [vmem:[%s485 + $0x8] sm:$0xff]
    %v489 = vsel %vm384, %v344, 0
    %491 = vmatpush.msra.mxu0 0.0
    %492 = vmatpush.msra.mxu0 0.0
    %493 = vmatpush.msra.mxu0 0.0
    %494 = vmatpush.msra.mxu0 0.0
    %495 = vmatpush.msra.mxu0 0.0
    %496 = vmatpush.msra.mxu0 0.0
    %497 = vmatpush.msra.mxu0 0.0
    %498 = vmatpush.msra.mxu0 0.0
    %499 = vmatpush.msra.mxu0 0.0
    %500 = vmatpush.msra.mxu0 0.0
    %501 = vmatpush.msra.mxu0 0.0
    %502 = vmatpush.msra.mxu0 0.0
    %503 = vmatpush.msra.mxu0 0.0
    %504 = vmatpush.msra.mxu0 0.0
    %505 = vmatpush.msra.mxu0 %v487
    %506 = vmatpush.msra.mxu0 %v486
    %507 = vmatmul.f32.gmra.mxu0 %v489
    %v508 = vpop.f32.mrf.mxu0
    %v509 = vadd.f32 0.0, %v508
    %510 = vdwg.mxu0
    %v511 = vadd.f32 %v484, %v509
    %s512 = scalar_lea.vmem %s4, 80
    %v513 = vld [vmem:[%s512] sm:$0xff]
    %v514 = vld [vmem:[%s512 + $0x8] sm:$0xff]
    %v516 = vsel %vm384, %v347, 0
    %518 = vmatpush.msra.mxu0 0.0
    %519 = vmatpush.msra.mxu0 0.0
    %520 = vmatpush.msra.mxu0 0.0
    %521 = vmatpush.msra.mxu0 0.0
    %522 = vmatpush.msra.mxu0 0.0
    %523 = vmatpush.msra.mxu0 0.0
    %524 = vmatpush.msra.mxu0 0.0
    %525 = vmatpush.msra.mxu0 0.0
    %526 = vmatpush.msra.mxu0 0.0
    %527 = vmatpush.msra.mxu0 0.0
    %528 = vmatpush.msra.mxu0 0.0
    %529 = vmatpush.msra.mxu0 0.0
    %530 = vmatpush.msra.mxu0 0.0
    %531 = vmatpush.msra.mxu0 0.0
    %532 = vmatpush.msra.mxu0 %v514
    %533 = vmatpush.msra.mxu0 %v513
    %534 = vmatmul.f32.gmra.mxu0 %v516
    %v535 = vpop.f32.mrf.mxu0
    %v536 = vadd.f32 0.0, %v535
    %537 = vdwg.mxu0
    %v538 = vadd.f32 %v511, %v536
    %s539 = scalar_lea.vmem %s4, 96
    %v540 = vld [vmem:[%s539] sm:$0xff]
    %v541 = vld [vmem:[%s539 + $0x8] sm:$0xff]
    %v543 = vsel %vm384, %v350, 0
    %545 = vmatpush.msra.mxu0 0.0
    %546 = vmatpush.msra.mxu0 0.0
    %547 = vmatpush.msra.mxu0 0.0
    %548 = vmatpush.msra.mxu0 0.0
    %549 = vmatpush.msra.mxu0 0.0
    %550 = vmatpush.msra.mxu0 0.0
    %551 = vmatpush.msra.mxu0 0.0
    %552 = vmatpush.msra.mxu0 0.0
    %553 = vmatpush.msra.mxu0 0.0
    %554 = vmatpush.msra.mxu0 0.0
    %555 = vmatpush.msra.mxu0 0.0
    %556 = vmatpush.msra.mxu0 0.0
    %557 = vmatpush.msra.mxu0 0.0
    %558 = vmatpush.msra.mxu0 0.0
    %559 = vmatpush.msra.mxu0 %v541
    %560 = vmatpush.msra.mxu0 %v540
    %561 = vmatmul.f32.gmra.mxu0 %v543
    %v562 = vpop.f32.mrf.mxu0
    %v563 = vadd.f32 0.0, %v562
    %564 = vdwg.mxu0
    %v565 = vadd.f32 %v538, %v563
    %s566 = scalar_lea.vmem %s4, 112
    %v567 = vld [vmem:[%s566] sm:$0xff]
    %v568 = vld [vmem:[%s566 + $0x8] sm:$0xff]
    %v570 = vsel %vm384, %v353, 0
    %572 = vmatpush.msra.mxu0 0.0
    %573 = vmatpush.msra.mxu0 0.0
    %574 = vmatpush.msra.mxu0 0.0
    %575 = vmatpush.msra.mxu0 0.0
    %576 = vmatpush.msra.mxu0 0.0
    %577 = vmatpush.msra.mxu0 0.0
    %578 = vmatpush.msra.mxu0 0.0
    %579 = vmatpush.msra.mxu0 0.0
    %580 = vmatpush.msra.mxu0 0.0
    %581 = vmatpush.msra.mxu0 0.0
    %582 = vmatpush.msra.mxu0 0.0
    %583 = vmatpush.msra.mxu0 0.0
    %584 = vmatpush.msra.mxu0 0.0
    %585 = vmatpush.msra.mxu0 0.0
    %586 = vmatpush.msra.mxu0 %v568
    %587 = vmatpush.msra.mxu0 %v567
    %588 = vmatmul.f32.gmra.mxu0 %v570
    %v589 = vpop.f32.mrf.mxu0
    %v590 = vadd.f32 0.0, %v589
    %591 = vdwg.mxu0
    %v592 = vadd.f32 %v565, %v590
    %s593 = scalar_lea.vmem %s4, 128
    %v594 = vld [vmem:[%s593] sm:$0xff]
    %v595 = vld [vmem:[%s593 + $0x8] sm:$0xff]
    %v597 = vsel %vm384, %v356, 0
    %599 = vmatpush.msra.mxu0 0.0
    %600 = vmatpush.msra.mxu0 0.0
    %601 = vmatpush.msra.mxu0 0.0
    %602 = vmatpush.msra.mxu0 0.0
    %603 = vmatpush.msra.mxu0 0.0
    %604 = vmatpush.msra.mxu0 0.0
    %605 = vmatpush.msra.mxu0 0.0
    %606 = vmatpush.msra.mxu0 0.0
    %607 = vmatpush.msra.mxu0 0.0
    %608 = vmatpush.msra.mxu0 0.0
    %609 = vmatpush.msra.mxu0 0.0
    %610 = vmatpush.msra.mxu0 0.0
    %611 = vmatpush.msra.mxu0 0.0
    %612 = vmatpush.msra.mxu0 0.0
    %613 = vmatpush.msra.mxu0 %v595
    %614 = vmatpush.msra.mxu0 %v594
    %615 = vmatmul.f32.gmra.mxu0 %v597
    %v616 = vpop.f32.mrf.mxu0
    %v617 = vadd.f32 0.0, %v616
    %618 = vdwg.mxu0
    %v619 = vadd.f32 %v592, %v617
    %s620 = scalar_lea.vmem %s4, 144
    %v621 = vld [vmem:[%s620] sm:$0xff]
    %v622 = vld [vmem:[%s620 + $0x8] sm:$0xff]
    %v624 = vsel %vm384, %v359, 0
    %626 = vmatpush.msra.mxu0 0.0
    %627 = vmatpush.msra.mxu0 0.0
    %628 = vmatpush.msra.mxu0 0.0
    %629 = vmatpush.msra.mxu0 0.0
    %630 = vmatpush.msra.mxu0 0.0
    %631 = vmatpush.msra.mxu0 0.0
    %632 = vmatpush.msra.mxu0 0.0
    %633 = vmatpush.msra.mxu0 0.0
    %634 = vmatpush.msra.mxu0 0.0
    %635 = vmatpush.msra.mxu0 0.0
    %636 = vmatpush.msra.mxu0 0.0
    %637 = vmatpush.msra.mxu0 0.0
    %638 = vmatpush.msra.mxu0 0.0
    %639 = vmatpush.msra.mxu0 0.0
    %640 = vmatpush.msra.mxu0 %v622
    %641 = vmatpush.msra.mxu0 %v621
    %642 = vmatmul.f32.gmra.mxu0 %v624
    %v643 = vpop.f32.mrf.mxu0
    %v644 = vadd.f32 0.0, %v643
    %645 = vdwg.mxu0
    %v646 = vadd.f32 %v619, %v644
    %s647 = scalar_lea.vmem %s4, 160
    %v648 = vld [vmem:[%s647] sm:$0xff]
    %v649 = vld [vmem:[%s647 + $0x8] sm:$0xff]
    %v651 = vsel %vm384, %v362, 0
    %653 = vmatpush.msra.mxu0 0.0
    %654 = vmatpush.msra.mxu0 0.0
    %655 = vmatpush.msra.mxu0 0.0
    %656 = vmatpush.msra.mxu0 0.0
    %657 = vmatpush.msra.mxu0 0.0
    %658 = vmatpush.msra.mxu0 0.0
    %659 = vmatpush.msra.mxu0 0.0
    %660 = vmatpush.msra.mxu0 0.0
    %661 = vmatpush.msra.mxu0 0.0
    %662 = vmatpush.msra.mxu0 0.0
    %663 = vmatpush.msra.mxu0 0.0
    %664 = vmatpush.msra.mxu0 0.0
    %665 = vmatpush.msra.mxu0 0.0
    %666 = vmatpush.msra.mxu0 0.0
    %667 = vmatpush.msra.mxu0 %v649
    %668 = vmatpush.msra.mxu0 %v648
    %669 = vmatmul.f32.gmra.mxu0 %v651
    %v670 = vpop.f32.mrf.mxu0
    %v671 = vadd.f32 0.0, %v670
    %672 = vdwg.mxu0
    %v673 = vadd.f32 %v646, %v671
    %s674 = scalar_lea.vmem %s4, 176
    %v675 = vld [vmem:[%s674] sm:$0xff]
    %v676 = vld [vmem:[%s674 + $0x8] sm:$0xff]
    %v678 = vsel %vm384, %v365, 0
    %680 = vmatpush.msra.mxu0 0.0
    %681 = vmatpush.msra.mxu0 0.0
    %682 = vmatpush.msra.mxu0 0.0
    %683 = vmatpush.msra.mxu0 0.0
    %684 = vmatpush.msra.mxu0 0.0
    %685 = vmatpush.msra.mxu0 0.0
    %686 = vmatpush.msra.mxu0 0.0
    %687 = vmatpush.msra.mxu0 0.0
    %688 = vmatpush.msra.mxu0 0.0
    %689 = vmatpush.msra.mxu0 0.0
    %690 = vmatpush.msra.mxu0 0.0
    %691 = vmatpush.msra.mxu0 0.0
    %692 = vmatpush.msra.mxu0 0.0
    %693 = vmatpush.msra.mxu0 0.0
    %694 = vmatpush.msra.mxu0 %v676
    %695 = vmatpush.msra.mxu0 %v675
    %696 = vmatmul.f32.gmra.mxu0 %v678
    %v697 = vpop.f32.mrf.mxu0
    %v698 = vadd.f32 0.0, %v697
    %699 = vdwg.mxu0
    %v700 = vadd.f32 %v673, %v698
    %s701 = scalar_lea.vmem %s4, 192
    %v702 = vld [vmem:[%s701] sm:$0xff]
    %v703 = vld [vmem:[%s701 + $0x8] sm:$0xff]
    %v705 = vsel %vm384, %v368, 0
    %707 = vmatpush.msra.mxu0 0.0
    %708 = vmatpush.msra.mxu0 0.0
    %709 = vmatpush.msra.mxu0 0.0
    %710 = vmatpush.msra.mxu0 0.0
    %711 = vmatpush.msra.mxu0 0.0
    %712 = vmatpush.msra.mxu0 0.0
    %713 = vmatpush.msra.mxu0 0.0
    %714 = vmatpush.msra.mxu0 0.0
    %715 = vmatpush.msra.mxu0 0.0
    %716 = vmatpush.msra.mxu0 0.0
    %717 = vmatpush.msra.mxu0 0.0
    %718 = vmatpush.msra.mxu0 0.0
    %719 = vmatpush.msra.mxu0 0.0
    %720 = vmatpush.msra.mxu0 0.0
    %721 = vmatpush.msra.mxu0 %v703
    %722 = vmatpush.msra.mxu0 %v702
    %723 = vmatmul.f32.gmra.mxu0 %v705
    %v724 = vpop.f32.mrf.mxu0
    %v725 = vadd.f32 0.0, %v724
    %726 = vdwg.mxu0
    %v727 = vadd.f32 %v700, %v725
    %s728 = scalar_lea.vmem %s4, 208
    %v729 = vld [vmem:[%s728] sm:$0xff]
    %v730 = vld [vmem:[%s728 + $0x8] sm:$0xff]
    %v732 = vsel %vm384, %v371, 0
    %734 = vmatpush.msra.mxu0 0.0
    %735 = vmatpush.msra.mxu0 0.0
    %736 = vmatpush.msra.mxu0 0.0
    %737 = vmatpush.msra.mxu0 0.0
    %738 = vmatpush.msra.mxu0 0.0
    %739 = vmatpush.msra.mxu0 0.0
    %740 = vmatpush.msra.mxu0 0.0
    %741 = vmatpush.msra.mxu0 0.0
    %742 = vmatpush.msra.mxu0 0.0
    %743 = vmatpush.msra.mxu0 0.0
    %744 = vmatpush.msra.mxu0 0.0
    %745 = vmatpush.msra.mxu0 0.0
    %746 = vmatpush.msra.mxu0 0.0
    %747 = vmatpush.msra.mxu0 0.0
    %748 = vmatpush.msra.mxu0 %v730
    %749 = vmatpush.msra.mxu0 %v729
    %750 = vmatmul.f32.gmra.mxu0 %v732
    %v751 = vpop.f32.mrf.mxu0
    %v752 = vadd.f32 0.0, %v751
    %753 = vdwg.mxu0
    %v754 = vadd.f32 %v727, %v752
    %s755 = scalar_lea.vmem %s4, 224
    %v756 = vld [vmem:[%s755] sm:$0xff]
    %v757 = vld [vmem:[%s755 + $0x8] sm:$0xff]
    %v759 = vsel %vm384, %v374, 0
    %761 = vmatpush.msra.mxu0 0.0
    %762 = vmatpush.msra.mxu0 0.0
    %763 = vmatpush.msra.mxu0 0.0
    %764 = vmatpush.msra.mxu0 0.0
    %765 = vmatpush.msra.mxu0 0.0
    %766 = vmatpush.msra.mxu0 0.0
    %767 = vmatpush.msra.mxu0 0.0
    %768 = vmatpush.msra.mxu0 0.0
    %769 = vmatpush.msra.mxu0 0.0
    %770 = vmatpush.msra.mxu0 0.0
    %771 = vmatpush.msra.mxu0 0.0
    %772 = vmatpush.msra.mxu0 0.0
    %773 = vmatpush.msra.mxu0 0.0
    %774 = vmatpush.msra.mxu0 0.0
    %775 = vmatpush.msra.mxu0 %v757
    %776 = vmatpush.msra.mxu0 %v756
    %777 = vmatmul.f32.gmra.mxu0 %v759
    %v778 = vpop.f32.mrf.mxu0
    %v779 = vadd.f32 0.0, %v778
    %780 = vdwg.mxu0
    %v781 = vadd.f32 %v754, %v779
    %s782 = scalar_lea.vmem %s4, 240
    %v783 = vld [vmem:[%s782] sm:$0xff]
    %v784 = vld [vmem:[%s782 + $0x8] sm:$0xff]
    %v786 = vsel %vm384, %v377, 0
    %788 = vmatpush.msra.mxu0 0.0
    %789 = vmatpush.msra.mxu0 0.0
    %790 = vmatpush.msra.mxu0 0.0
    %791 = vmatpush.msra.mxu0 0.0
    %792 = vmatpush.msra.mxu0 0.0
    %793 = vmatpush.msra.mxu0 0.0
    %794 = vmatpush.msra.mxu0 0.0
    %795 = vmatpush.msra.mxu0 0.0
    %796 = vmatpush.msra.mxu0 0.0
    %797 = vmatpush.msra.mxu0 0.0
    %798 = vmatpush.msra.mxu0 0.0
    %799 = vmatpush.msra.mxu0 0.0
    %800 = vmatpush.msra.mxu0 0.0
    %801 = vmatpush.msra.mxu0 0.0
    %802 = vmatpush.msra.mxu0 %v784
    %803 = vmatpush.msra.mxu0 %v783
    %804 = vmatmul.f32.gmra.mxu0 %v786
    %v805 = vpop.f32.mrf.mxu0
    %v806 = vadd.f32 0.0, %v805
    %807 = vdwg.mxu0
    %v808 = vadd.f32 %v781, %v806
    %v809 = vperm.slane %v27, 3
    %v810 = vadd.f32 %v808, %v809
    %v811 = vmax.f32 %v810, 0.0
    %v812 = vld [vmem:[%s5] sm:$0xff]
    %v813 = vld [vmem:[%s5 + $0x8] sm:$0xff]
    %v814 = vld [vmem:[%s5 + $0x10] sm:$0xff]
    %v815 = vld [vmem:[%s5 + $0x18] sm:$0xff]
    %v816 = vld [vmem:[%s5 + $0x20] sm:$0xff]
    %v817 = vld [vmem:[%s5 + $0x28] sm:$0xff]
    %v818 = vld [vmem:[%s5 + $0x30] sm:$0xff]
    %v819 = vld [vmem:[%s5 + $0x38] sm:$0xff]
    %s820 = scalar_lea.vmem %s5, 64
    %v821 = vld [vmem:[%s820] sm:$0xff]
    %v822 = vld [vmem:[%s820 + $0x8] sm:$0xff]
    %v823 = vld [vmem:[%s820 + $0x10] sm:$0xff]
    %v824 = vld [vmem:[%s820 + $0x18] sm:$0xff]
    %v825 = vld [vmem:[%s820 + $0x20] sm:$0xff]
    %v826 = vld [vmem:[%s820 + $0x28] sm:$0xff]
    %v827 = vld [vmem:[%s820 + $0x30] sm:$0xff]
    %v828 = vld [vmem:[%s820 + $0x38] sm:$0xff]
    %v830 = vrot.slane %v811, 2
    %vm831 = vcmask 261120
    %v832 = vsel %vm831, %v830, 0
    %834 = vmatpush.msra.mxu0 0.0
    %835 = vmatpush.msra.mxu0 0.0
    %836 = vmatpush.msra.mxu0 0.0
    %837 = vmatpush.msra.mxu0 0.0
    %838 = vmatpush.msra.mxu0 0.0
    %839 = vmatpush.msra.mxu0 0.0
    %840 = vmatpush.msra.mxu0 0.0
    %841 = vmatpush.msra.mxu0 0.0
    %842 = vmatpush.msra.mxu0 0.0
    %843 = vmatpush.msra.mxu0 0.0
    %844 = vmatpush.msra.mxu0 0.0
    %845 = vmatpush.msra.mxu0 0.0
    %846 = vmatpush.msra.mxu0 %v827
    %847 = vmatpush.msra.mxu0 %v825
    %848 = vmatpush.msra.mxu0 %v823
    %849 = vmatpush.msra.mxu0 %v821
    %850 = vmatmul.f32.gmra.mxu0 %v832
    %v851 = vpop.f32.mrf.mxu0
    %v852 = vadd.f32 0.0, %v851
    %853 = vdwg.mxu0
    %854 = vmatpush.msra.mxu0 0.0
    %855 = vmatpush.msra.mxu0 0.0
    %856 = vmatpush.msra.mxu0 0.0
    %857 = vmatpush.msra.mxu0 0.0
    %858 = vmatpush.msra.mxu0 0.0
    %859 = vmatpush.msra.mxu0 0.0
    %860 = vmatpush.msra.mxu0 0.0
    %861 = vmatpush.msra.mxu0 0.0
    %862 = vmatpush.msra.mxu0 0.0
    %863 = vmatpush.msra.mxu0 0.0
    %864 = vmatpush.msra.mxu0 0.0
    %865 = vmatpush.msra.mxu0 0.0
    %866 = vmatpush.msra.mxu0 %v828
    %867 = vmatpush.msra.mxu0 %v826
    %868 = vmatpush.msra.mxu0 %v824
    %869 = vmatpush.msra.mxu0 %v822
    %870 = vmatmul.f32.gmra.mxu0 %v832
    %v871 = vpop.f32.mrf.mxu0
    %v872 = vadd.f32 0.0, %v871
    %873 = vdwg.mxu0
    %v874 = vsel %vm831, %v811, 0
    %876 = vmatpush.msra.mxu0 0.0
    %877 = vmatpush.msra.mxu0 0.0
    %878 = vmatpush.msra.mxu0 0.0
    %879 = vmatpush.msra.mxu0 0.0
    %880 = vmatpush.msra.mxu0 0.0
    %881 = vmatpush.msra.mxu0 0.0
    %882 = vmatpush.msra.mxu0 0.0
    %883 = vmatpush.msra.mxu0 0.0
    %884 = vmatpush.msra.mxu0 0.0
    %885 = vmatpush.msra.mxu0 0.0
    %886 = vmatpush.msra.mxu0 0.0
    %887 = vmatpush.msra.mxu0 0.0
    %888 = vmatpush.msra.mxu0 %v818
    %889 = vmatpush.msra.mxu0 %v816
    %890 = vmatpush.msra.mxu0 %v814
    %891 = vmatpush.msra.mxu0 %v812
    %892 = vmatmul.f32.gmra.mxu0 %v874
    %v893 = vpop.f32.mrf.mxu0
    %v894 = vadd.f32 %v852, %v893
    %895 = vdwg.mxu0
    %896 = vmatpush.msra.mxu0 0.0
    %897 = vmatpush.msra.mxu0 0.0
    %898 = vmatpush.msra.mxu0 0.0
    %899 = vmatpush.msra.mxu0 0.0
    %900 = vmatpush.msra.mxu0 0.0
    %901 = vmatpush.msra.mxu0 0.0
    %902 = vmatpush.msra.mxu0 0.0
    %903 = vmatpush.msra.mxu0 0.0
    %904 = vmatpush.msra.mxu0 0.0
    %905 = vmatpush.msra.mxu0 0.0
    %906 = vmatpush.msra.mxu0 0.0
    %907 = vmatpush.msra.mxu0 0.0
    %908 = vmatpush.msra.mxu0 %v819
    %909 = vmatpush.msra.mxu0 %v817
    %910 = vmatpush.msra.mxu0 %v815
    %911 = vmatpush.msra.mxu0 %v813
    %912 = vmatmul.f32.gmra.mxu0 %v874
    %v913 = vpop.f32.mrf.mxu0
    %v914 = vadd.f32 %v872, %v913
    %915 = vdwg.mxu0
    %s916 = scalar_lea.vmem %s5, 128
    %v917 = vld [vmem:[%s916] sm:$0xff]
    %v918 = vld [vmem:[%s916 + $0x8] sm:$0xff]
    %v919 = vld [vmem:[%s916 + $0x10] sm:$0xff]
    %v920 = vld [vmem:[%s916 + $0x18] sm:$0xff]
    %v921 = vld [vmem:[%s916 + $0x20] sm:$0xff]
    %v922 = vld [vmem:[%s916 + $0x28] sm:$0xff]
    %v923 = vld [vmem:[%s916 + $0x30] sm:$0xff]
    %v924 = vld [vmem:[%s916 + $0x38] sm:$0xff]
    %v925 = vrot.slane %v811, 4
    %v926 = vsel %vm831, %v925, 0
    %928 = vmatpush.msra.mxu0 0.0
    %929 = vmatpush.msra.mxu0 0.0
    %930 = vmatpush.msra.mxu0 0.0
    %931 = vmatpush.msra.mxu0 0.0
    %932 = vmatpush.msra.mxu0 0.0
    %933 = vmatpush.msra.mxu0 0.0
    %934 = vmatpush.msra.mxu0 0.0
    %935 = vmatpush.msra.mxu0 0.0
    %936 = vmatpush.msra.mxu0 0.0
    %937 = vmatpush.msra.mxu0 0.0
    %938 = vmatpush.msra.mxu0 0.0
    %939 = vmatpush.msra.mxu0 0.0
    %940 = vmatpush.msra.mxu0 %v923
    %941 = vmatpush.msra.mxu0 %v921
    %942 = vmatpush.msra.mxu0 %v919
    %943 = vmatpush.msra.mxu0 %v917
    %944 = vmatmul.f32.gmra.mxu0 %v926
    %v945 = vpop.f32.mrf.mxu0
    %v946 = vadd.f32 0.0, %v945
    %947 = vdwg.mxu0
    %948 = vmatpush.msra.mxu0 0.0
    %949 = vmatpush.msra.mxu0 0.0
    %950 = vmatpush.msra.mxu0 0.0
    %951 = vmatpush.msra.mxu0 0.0
    %952 = vmatpush.msra.mxu0 0.0
    %953 = vmatpush.msra.mxu0 0.0
    %954 = vmatpush.msra.mxu0 0.0
    %955 = vmatpush.msra.mxu0 0.0
    %956 = vmatpush.msra.mxu0 0.0
    %957 = vmatpush.msra.mxu0 0.0
    %958 = vmatpush.msra.mxu0 0.0
    %959 = vmatpush.msra.mxu0 0.0
    %960 = vmatpush.msra.mxu0 %v924
    %961 = vmatpush.msra.mxu0 %v922
    %962 = vmatpush.msra.mxu0 %v920
    %963 = vmatpush.msra.mxu0 %v918
    %964 = vmatmul.f32.gmra.mxu0 %v926
    %v965 = vpop.f32.mrf.mxu0
    %v966 = vadd.f32 0.0, %v965
    %967 = vdwg.mxu0
    %v968 = vadd.f32 %v894, %v946
    %v969 = vadd.f32 %v914, %v966
    %s970 = scalar_lea.vmem %s5, 192
    %v971 = vld [vmem:[%s970] sm:$0xff]
    %v972 = vld [vmem:[%s970 + $0x8] sm:$0xff]
    %v973 = vld [vmem:[%s970 + $0x10] sm:$0xff]
    %v974 = vld [vmem:[%s970 + $0x18] sm:$0xff]
    %v975 = vld [vmem:[%s970 + $0x20] sm:$0xff]
    %v976 = vld [vmem:[%s970 + $0x28] sm:$0xff]
    %v977 = vld [vmem:[%s970 + $0x30] sm:$0xff]
    %v978 = vld [vmem:[%s970 + $0x38] sm:$0xff]
    %v979 = vrot.slane %v811, 6
    %v980 = vsel %vm831, %v979, 0
    %982 = vmatpush.msra.mxu0 0.0
    %983 = vmatpush.msra.mxu0 0.0
    %984 = vmatpush.msra.mxu0 0.0
    %985 = vmatpush.msra.mxu0 0.0
    %986 = vmatpush.msra.mxu0 0.0
    %987 = vmatpush.msra.mxu0 0.0
    %988 = vmatpush.msra.mxu0 0.0
    %989 = vmatpush.msra.mxu0 0.0
    %990 = vmatpush.msra.mxu0 0.0
    %991 = vmatpush.msra.mxu0 0.0
    %992 = vmatpush.msra.mxu0 0.0
    %993 = vmatpush.msra.mxu0 0.0
    %994 = vmatpush.msra.mxu0 %v977
    %995 = vmatpush.msra.mxu0 %v975
    %996 = vmatpush.msra.mxu0 %v973
    %997 = vmatpush.msra.mxu0 %v971
    %998 = vmatmul.f32.gmra.mxu0 %v980
    %v999 = vpop.f32.mrf.mxu0
    %v1000 = vadd.f32 0.0, %v999
    %1001 = vdwg.mxu0
    %1002 = vmatpush.msra.mxu0 0.0
    %1003 = vmatpush.msra.mxu0 0.0
    %1004 = vmatpush.msra.mxu0 0.0
    %1005 = vmatpush.msra.mxu0 0.0
    %1006 = vmatpush.msra.mxu0 0.0
    %1007 = vmatpush.msra.mxu0 0.0
    %1008 = vmatpush.msra.mxu0 0.0
    %1009 = vmatpush.msra.mxu0 0.0
    %1010 = vmatpush.msra.mxu0 0.0
    %1011 = vmatpush.msra.mxu0 0.0
    %1012 = vmatpush.msra.mxu0 0.0
    %1013 = vmatpush.msra.mxu0 0.0
    %1014 = vmatpush.msra.mxu0 %v978
    %1015 = vmatpush.msra.mxu0 %v976
    %1016 = vmatpush.msra.mxu0 %v974
    %1017 = vmatpush.msra.mxu0 %v972
    %1018 = vmatmul.f32.gmra.mxu0 %v980
    %v1019 = vpop.f32.mrf.mxu0
    %v1020 = vadd.f32 0.0, %v1019
    %1021 = vdwg.mxu0
    %v1022 = vadd.f32 %v968, %v1000
    %v1023 = vadd.f32 %v969, %v1020
    %v1024 = vperm.slane %v27, 7
    %v1025 = vperm.slane %v28, 7
    %v1026 = vadd.f32 %v1022, %v1024
    %v1027 = vadd.f32 %v1023, %v1025
    %v1028 = vmax.f32 %v1026, 0.0
    %v1029 = vmax.f32 %v1027, 0.0
    %v1030 = vld [vmem:[%s6] sm:$0xff]
    %v1031 = vld [vmem:[%s6 + $0x8] sm:$0xff]
    %v1032 = vld [vmem:[%s6 + $0x10] sm:$0xff]
    %v1033 = vld [vmem:[%s6 + $0x18] sm:$0xff]
    %v1034 = vld [vmem:[%s6 + $0x20] sm:$0xff]
    %v1035 = vld [vmem:[%s6 + $0x28] sm:$0xff]
    %v1036 = vld [vmem:[%s6 + $0x30] sm:$0xff]
    %v1037 = vld [vmem:[%s6 + $0x38] sm:$0xff]
    %v1038 = vld [vmem:[%s6 + $0x40] sm:$0xff]
    %v1039 = vld [vmem:[%s6 + $0x48] sm:$0xff]
    %v1040 = vld [vmem:[%s6 + $0x50] sm:$0xff]
    %v1041 = vld [vmem:[%s6 + $0x58] sm:$0xff]
    %v1042 = vld [vmem:[%s6 + $0x60] sm:$0xff]
    %v1043 = vld [vmem:[%s6 + $0x68] sm:$0xff]
    %v1044 = vld [vmem:[%s6 + $0x70] sm:$0xff]
    %v1045 = vld [vmem:[%s6 + $0x78] sm:$0xff]
    %v1046 = vld [vmem:[%s6 + $0x80] sm:$0xff]
    %v1047 = vld [vmem:[%s6 + $0x88] sm:$0xff]
    %v1048 = vld [vmem:[%s6 + $0x90] sm:$0xff]
    %v1049 = vld [vmem:[%s6 + $0x98] sm:$0xff]
    %v1050 = vld [vmem:[%s6 + $0xa0] sm:$0xff]
    %v1051 = vld [vmem:[%s6 + $0xa8] sm:$0xff]
    %v1052 = vld [vmem:[%s6 + $0xb0] sm:$0xff]
    %v1053 = vld [vmem:[%s6 + $0xb8] sm:$0xff]
    %v1054 = vld [vmem:[%s6 + $0xc0] sm:$0xff]
    %v1055 = vld [vmem:[%s6 + $0xc8] sm:$0xff]
    %v1056 = vld [vmem:[%s6 + $0xd0] sm:$0xff]
    %v1057 = vld [vmem:[%s6 + $0xd8] sm:$0xff]
    %v1058 = vld [vmem:[%s6 + $0xe0] sm:$0xff]
    %v1059 = vld [vmem:[%s6 + $0xe8] sm:$0xff]
    %v1060 = vld [vmem:[%s6 + $0xf0] sm:$0xff]
    %v1061 = vld [vmem:[%s6 + $0xf8] sm:$0xff]
    %v1062 = vperm.slane %v27, 6
    %1063 = vmatpush.msra.mxu0 %v1045
    %1064 = vmatpush.msra.mxu0 %v1044
    %1065 = vmatpush.msra.mxu0 %v1043
    %1066 = vmatpush.msra.mxu0 %v1042
    %1067 = vmatpush.msra.mxu0 %v1041
    %1068 = vmatpush.msra.mxu0 %v1040
    %1069 = vmatpush.msra.mxu0 %v1039
    %1070 = vmatpush.msra.mxu0 %v1038
    %1071 = vmatpush.msra.mxu0 %v1037
    %1072 = vmatpush.msra.mxu0 %v1036
    %1073 = vmatpush.msra.mxu0 %v1035
    %1074 = vmatpush.msra.mxu0 %v1034
    %1075 = vmatpush.msra.mxu0 %v1033
    %1076 = vmatpush.msra.mxu0 %v1032
    %1077 = vmatpush.msra.mxu0 %v1031
    %1078 = vmatpush.msra.mxu0 %v1030
    %1079 = vmatmul.f32.gmra.mxu0 %v1028
    %v1080 = vpop.f32.mrf.mxu0
    %v1081 = vadd.f32 %v1062, %v1080
    %1082 = vdwg.mxu0
    %1083 = vmatpush.msra.mxu0 %v1061
    %1084 = vmatpush.msra.mxu0 %v1060
    %1085 = vmatpush.msra.mxu0 %v1059
    %1086 = vmatpush.msra.mxu0 %v1058
    %1087 = vmatpush.msra.mxu0 %v1057
    %1088 = vmatpush.msra.mxu0 %v1056
    %1089 = vmatpush.msra.mxu0 %v1055
    %1090 = vmatpush.msra.mxu0 %v1054
    %1091 = vmatpush.msra.mxu0 %v1053
    %1092 = vmatpush.msra.mxu0 %v1052
    %1093 = vmatpush.msra.mxu0 %v1051
    %1094 = vmatpush.msra.mxu0 %v1050
    %1095 = vmatpush.msra.mxu0 %v1049
    %1096 = vmatpush.msra.mxu0 %v1048
    %1097 = vmatpush.msra.mxu0 %v1047
    %1098 = vmatpush.msra.mxu0 %v1046
    %1099 = vmatmul.f32.gmra.mxu0 %v1029
    %v1100 = vpop.f32.mrf.mxu0
    %v1101 = vadd.f32 %v1081, %v1100
    %1102 = vdwg.mxu0
    %1103 = vst [vmem:[#allocation2] sm:$0x3] %v1101
    // Predicated region
    $region30: #{dqn_forward.1} parent=1 // pred_check
      _
    $region31: #{dqn_forward.1} parent=1 // pred_check_branch
      %1105 = sbr.rel (0) target = $region33
    $region32: #{dqn_forward.1} parent=1 // pred_region
      %1107 = vsyncadd [#allocation3], 0
      %s1109 = sshll.u32 [#allocation2], 4
      %s1110 = int_to_ptr.vmem [resolvable:$true] %s1109
      %s1111 = sshll.u32 %s7, 4
      %s1112 = int_to_ptr.hbm [resolvable:$true] %s1111
      %1114 = dma.vmem_to_hbm [thread:$0]  %s1110, 32, %s1112, [#allocation3]
    $region33: #{dqn_forward.1} parent=1 // pred_fallthru
      _
    // Predicated region
    $region34: #{dqn_forward.1} parent=1 // pred_check
      _
    $region35: #{dqn_forward.1} parent=1 // pred_check_branch
      %1116 = sbr.rel (0) target = $region37
    $region36: #{dqn_forward.1} parent=1 // pred_region
      %1118 = dma.done [#allocation3], 32
    $region37: #{dqn_forward.1} parent=1 // pred_fallthru
      _
    %1119 = vsyncpa [#allocation3], 1

</llo_original>
